<compile_context>
chip_gen: v7x
topology: tpu7x:2x2x1
jax: 0.10.0
libtpu: 0.0.40
codegen_flags: <defaults>
</compile_context>

<pallas_src>
import functools

import numpy as np
import jax
import jax.numpy as jnp
from jax.experimental import pallas as pl
from jax.experimental.pallas import tpu as pltpu


def _upsample_conv_kernel(rowmap_ref, x_ref, s_ref, w_ref, b_ref, o_ref, *,
                          ksize, stride, n_rows):
    """One (image, output-row-tile) per grid step.

    rowmap_ref: (H_pad,) int32 SMEM     padded-upsampled row -> original row
    x_ref:      (1, C_in, H, W)         original image (VMEM resident per n)
    s_ref:      (W, K*W_out)            column upsample+reflect+kx-shift one-hot
    w_ref:      (C_out*TH, K*n_rows*C_in) banded im2col conv weights
    b_ref:      (C_out*TH, 1)           bias replicated per output row
    o_ref:      (1, C_out, TH, W_out)   output tile (NCHW block)
    """
    _, c_out, th, w_out = o_ref.shape
    r = pl.program_id(1)
    base = r * (th * stride)           # first padded-upsampled row of this tile

    # ---- fused nearest row-upsample + row reflection pad (rowmap gather) ----
    rows = []
    for jj in range(n_rows):
        ridx = rowmap_ref[base + jj]                       # SMEM scalar read
        rows.append(x_ref[0, :, pl.ds(ridx, 1), :][:, 0, :])   # (C_in, W)
    xrows = jnp.concatenate(rows, axis=0)                  # (n_rows*C_in, W)

    # ---- fused nearest col-upsample + col reflection pad + kx shifts --------
    # Exact 0/1 selection matmul (HIGHEST precision so values are not rounded).
    patch_pre = jnp.dot(xrows, s_ref[...],
                        preferred_element_type=jnp.float32,
                        precision=jax.lax.Precision.HIGHEST)  # (n_rows*C_in, K*W_out)

    # Move the kx blocks from lanes into the contraction (sublane) dimension.
    patch = jnp.concatenate(
        [patch_pre[:, kx * w_out:(kx + 1) * w_out] for kx in range(ksize)],
        axis=0)                                            # (K*n_rows*C_in, W_out)

    # ---- single banded im2col conv matmul, lane dim = W_out (spatial) -------
    out2d = jnp.dot(w_ref[...], patch,
                    preferred_element_type=jnp.float32)    # (C_out*TH, W_out)

    out2d = jnp.maximum(out2d + b_ref[...], 0.0)           # bias + ReLU (f32)
    # Leading-dim split only (minor dim preserved) -> cheap, layout friendly.
    o_ref[0] = out2d.reshape(c_out, th, w_out).astype(o_ref.dtype)


def upsample_conv_layer(x, weight, bias, *, kernel_size, stride, upsample=None):
    """UpsampleConvLayer.forward.  x: (N, C_in, H, W) NCHW; returns NCHW."""
    n, c_in, h, w = x.shape
    c_out = weight.shape[0]
    k = int(kernel_size)
    s = int(stride)
    u = int(upsample) if upsample else 1
    p = k // 2

    h_up, w_up = h * u, w * u
    h_pad, w_pad = h_up + 2 * p, w_up + 2 * p
    h_out = (h_pad - k) // s + 1
    w_out = (w_pad - k) // s + 1

    # Output-row tile height (second-minor of the output block must be a
    # multiple of 8 or the full extent).
    th = 8 if h_out % 8 == 0 else h_out
    n_tiles = h_out // th
    n_rows = (th - 1) * s + k           # padded-upsampled rows needed per tile

    # ---------------- static index plumbing (host-side numpy) ---------------
    def _reflect_map(length_pad, length_up):
        j = np.arange(length_pad)
        rr = np.abs(j - p)
        rr = (length_up - 1) - np.abs((length_up - 1) - rr)
        rr = np.clip(rr, 0, length_up - 1)
        return rr // u                  # -> original index

    rowmap = _reflect_map(h_pad, h_up).astype(np.int32)                # (H_pad,)
    colmap = _reflect_map(w_pad, w_up)                                 # (W_pad,)

    # One-hot column-selection matrix folding nearest column upsample,
    # column reflection pad and the K horizontal (kx) conv-window shifts.
    sel = (colmap[None, :] == np.arange(w)[:, None]).astype(np.float32)  # (W, W_pad)
    s_stack = np.concatenate(
        [sel[:, kx: kx + (w_out - 1) * s + 1: s] for kx in range(k)],
        axis=1)                                                        # (W, K*W_out)

    # Banded im2col weight: row (co*TH + t), col (kx, jj, c); nonzero iff
    # jj == t*s + ky for some ky in [0, K).
    w_kxkyc = jnp.transpose(weight, (0, 3, 2, 1))          # (C_out, K, K, C_in)
    bigw = jnp.zeros((c_out, th, k, n_rows, c_in), weight.dtype)
    for t in range(th):
        bigw = bigw.at[:, t, :, t * s: t * s + k, :].set(w_kxkyc)
    bigw = bigw.reshape(c_out * th, k * n_rows * c_in)

    b_rep = jnp.repeat(bias, th).reshape(c_out * th, 1)

    kernel = functools.partial(_upsample_conv_kernel,
                               ksize=k, stride=s, n_rows=n_rows)

    flops = int(2 * n * h_out * w_out * k * k * c_in * c_out)
    bytes_accessed = int(4 * (x.size + bigw.size + s_stack.size
                              + n * c_out * h_out * w_out))

    out = pl.pallas_call(
        kernel,
        out_shape=jax.ShapeDtypeStruct((n, c_out, h_out, w_out), x.dtype),
        grid_spec=pltpu.PrefetchScalarGridSpec(
            num_scalar_prefetch=1,
            grid=(n, n_tiles),
            in_specs=[
                # Whole (small, pre-upsample) image; resident across row tiles.
                pl.BlockSpec((1, c_in, h, w), lambda b, r, rm: (b, 0, 0, 0)),
                pl.BlockSpec((w, k * w_out), lambda b, r, rm: (0, 0)),
                pl.BlockSpec((c_out * th, k * n_rows * c_in),
                             lambda b, r, rm: (0, 0)),
                pl.BlockSpec((c_out * th, 1), lambda b, r, rm: (0, 0)),
            ],
            out_specs=pl.BlockSpec((1, c_out, th, w_out),
                                   lambda b, r, rm: (b, 0, r, 0)),
        ),
        compiler_params=pltpu.CompilerParams(
            dimension_semantics=("parallel", "arbitrary")),
        cost_estimate=pl.CostEstimate(flops=flops, transcendentals=0,
                                      bytes_accessed=bytes_accessed),
    )(jnp.asarray(rowmap), x, jnp.asarray(s_stack), bigw, b_rep)

    return out


def _reference(x, weight, bias, *, kernel_size, stride, upsample):
    """Pure-JAX reference of the same forward pass (NCHW)."""
    if upsample:
        x = jnp.repeat(x, upsample, axis=2)
        x = jnp.repeat(x, upsample, axis=3)
    p = kernel_size // 2
    if p > 0:
        x = jnp.pad(x, ((0, 0), (0, 0), (p, p), (p, p)), mode="reflect")
    y = jax.lax.conv_general_dilated(
        x, weight, window_strides=(stride, stride), padding="VALID",
        dimension_numbers=("NCHW", "OIHW", "NCHW"))
    return jnp.maximum(y + bias.reshape(1, -1, 1, 1), 0.0)


if __name__ == "__main__":
    # Small deterministic config:
    #   in_channels=4, out_channels=8, kernel_size=3, stride=1, upsample=2
    N, C_IN, H, W = 2, 4, 16, 16
    C_OUT, K, STRIDE, UPSAMPLE = 8, 3, 1, 2

    key = jax.random.PRNGKey(0)
    kx_, kw_, kb_ = jax.random.split(key, 3)

    x = jax.random.normal(kx_, (N, C_IN, H, W), dtype=jnp.float32)

    # Deterministic PyTorch-like init: U(-bound, bound), bound = 1/sqrt(fan_in)
    fan_in = C_IN * K * K
    bound = 1.0 / (fan_in ** 0.5)
    weight = jax.random.uniform(kw_, (C_OUT, C_IN, K, K), jnp.float32,
                                minval=-bound, maxval=bound)
    bias = jax.random.uniform(kb_, (C_OUT,), jnp.float32,
                              minval=-bound, maxval=bound)

    out = upsample_conv_layer(x, weight, bias, kernel_size=K, stride=STRIDE,
                              upsample=UPSAMPLE)
    out = jax.block_until_ready(out)

    ref = _reference(x, weight, bias, kernel_size=K, stride=STRIDE,
                     upsample=UPSAMPLE)
    ref = jax.block_until_ready(ref)

    assert out.shape == (N, C_OUT, H * UPSAMPLE, W * UPSAMPLE), out.shape
    assert jnp.allclose(out, ref, atol=1e-4, rtol=1e-4), float(
        jnp.max(jnp.abs(out - ref)))

    print("KERNEL_OK")
</pallas_src>

<mosaic_0001>
module attributes {stable_mosaic.version = 11 : i64} {
  func.func @_upsample_conv_kernel(%arg0: i32, %arg1: i32, %arg2: memref<34xi32, #tpu.memory_space<smem>>, %arg3: memref<1x4x16x16xf32, #tpu.memory_space<vmem>>, %arg4: memref<16x96xf32, #tpu.memory_space<vmem>>, %arg5: memref<64x120xf32, #tpu.memory_space<vmem>>, %arg6: memref<64x1xf32, #tpu.memory_space<vmem>>, %arg7: memref<1x8x8x32xf32, #tpu.memory_space<vmem>>) attributes {dimension_semantics = [#tpu.dimension_semantics<parallel>, #tpu.dimension_semantics<arbitrary>], iteration_bounds = array<i64: 2, 4>, scalar_prefetch = 1 : i64, scratch_operands = 0 : i64, tpu.core_type = #tpu.core_type<tc>, window_params = [{transform_indices = @transform_0, window_bounds = array<i64: 1, 4, 16, 16>}, {pipeline_mode = #tpu.pipeline_mode<synchronous>, transform_indices = @transform_1, window_bounds = array<i64: 16, 96>}, {pipeline_mode = #tpu.pipeline_mode<synchronous>, transform_indices = @transform_2, window_bounds = array<i64: 64, 120>}, {pipeline_mode = #tpu.pipeline_mode<synchronous>, transform_indices = @transform_3, window_bounds = array<i64: 64, 1>}, {transform_indices = @transform_4, window_bounds = array<i64: 1, 8, 8, 32>}]} {
    %c8_i32 = arith.constant 8 : i32
    %0 = arith.muli %arg1, %c8_i32 : i32
    %c0_i32 = arith.constant 0 : i32
    %1 = arith.addi %0, %c0_i32 : i32
    %2 = arith.index_cast %1 : i32 to index
    %3 = memref.load %arg2[%2] : memref<34xi32, #tpu.memory_space<smem>>
    %c0 = arith.constant 0 : index
    %c0_0 = arith.constant 0 : index
    %4 = arith.index_cast %3 : i32 to index
    %c0_1 = arith.constant 0 : index
    %5 = vector.load %arg3[%c0, %c0_0, %4, %c0_1] : memref<1x4x16x16xf32, #tpu.memory_space<vmem>>, vector<1x4x1x16xf32>
    %6 = vector.shape_cast %5 : vector<1x4x1x16xf32> to vector<4x1x16xf32>
    %7 = vector.shape_cast %6 : vector<4x1x16xf32> to vector<4x16xf32>
    %c1_i32 = arith.constant 1 : i32
    %8 = arith.addi %0, %c1_i32 : i32
    %9 = arith.index_cast %8 : i32 to index
    %10 = memref.load %arg2[%9] : memref<34xi32, #tpu.memory_space<smem>>
    %c0_2 = arith.constant 0 : index
    %c0_3 = arith.constant 0 : index
    %11 = arith.index_cast %10 : i32 to index
    %c0_4 = arith.constant 0 : index
    %12 = vector.load %arg3[%c0_2, %c0_3, %11, %c0_4] : memref<1x4x16x16xf32, #tpu.memory_space<vmem>>, vector<1x4x1x16xf32>
    %13 = vector.shape_cast %12 : vector<1x4x1x16xf32> to vector<4x1x16xf32>
    %14 = vector.shape_cast %13 : vector<4x1x16xf32> to vector<4x16xf32>
    %c2_i32 = arith.constant 2 : i32
    %15 = arith.addi %0, %c2_i32 : i32
    %16 = arith.index_cast %15 : i32 to index
    %17 = memref.load %arg2[%16] : memref<34xi32, #tpu.memory_space<smem>>
    %c0_5 = arith.constant 0 : index
    %c0_6 = arith.constant 0 : index
    %18 = arith.index_cast %17 : i32 to index
    %c0_7 = arith.constant 0 : index
    %19 = vector.load %arg3[%c0_5, %c0_6, %18, %c0_7] : memref<1x4x16x16xf32, #tpu.memory_space<vmem>>, vector<1x4x1x16xf32>
    %20 = vector.shape_cast %19 : vector<1x4x1x16xf32> to vector<4x1x16xf32>
    %21 = vector.shape_cast %20 : vector<4x1x16xf32> to vector<4x16xf32>
    %c3_i32 = arith.constant 3 : i32
    %22 = arith.addi %0, %c3_i32 : i32
    %23 = arith.index_cast %22 : i32 to index
    %24 = memref.load %arg2[%23] : memref<34xi32, #tpu.memory_space<smem>>
    %c0_8 = arith.constant 0 : index
    %c0_9 = arith.constant 0 : index
    %25 = arith.index_cast %24 : i32 to index
    %c0_10 = arith.constant 0 : index
    %26 = vector.load %arg3[%c0_8, %c0_9, %25, %c0_10] : memref<1x4x16x16xf32, #tpu.memory_space<vmem>>, vector<1x4x1x16xf32>
    %27 = vector.shape_cast %26 : vector<1x4x1x16xf32> to vector<4x1x16xf32>
    %28 = vector.shape_cast %27 : vector<4x1x16xf32> to vector<4x16xf32>
    %c4_i32 = arith.constant 4 : i32
    %29 = arith.addi %0, %c4_i32 : i32
    %30 = arith.index_cast %29 : i32 to index
    %31 = memref.load %arg2[%30] : memref<34xi32, #tpu.memory_space<smem>>
    %c0_11 = arith.constant 0 : index
    %c0_12 = arith.constant 0 : index
    %32 = arith.index_cast %31 : i32 to index
    %c0_13 = arith.constant 0 : index
    %33 = vector.load %arg3[%c0_11, %c0_12, %32, %c0_13] : memref<1x4x16x16xf32, #tpu.memory_space<vmem>>, vector<1x4x1x16xf32>
    %34 = vector.shape_cast %33 : vector<1x4x1x16xf32> to vector<4x1x16xf32>
    %35 = vector.shape_cast %34 : vector<4x1x16xf32> to vector<4x16xf32>
    %c5_i32 = arith.constant 5 : i32
    %36 = arith.addi %0, %c5_i32 : i32
    %37 = arith.index_cast %36 : i32 to index
    %38 = memref.load %arg2[%37] : memref<34xi32, #tpu.memory_space<smem>>
    %c0_14 = arith.constant 0 : index
    %c0_15 = arith.constant 0 : index
    %39 = arith.index_cast %38 : i32 to index
    %c0_16 = arith.constant 0 : index
    %40 = vector.load %arg3[%c0_14, %c0_15, %39, %c0_16] : memref<1x4x16x16xf32, #tpu.memory_space<vmem>>, vector<1x4x1x16xf32>
    %41 = vector.shape_cast %40 : vector<1x4x1x16xf32> to vector<4x1x16xf32>
    %42 = vector.shape_cast %41 : vector<4x1x16xf32> to vector<4x16xf32>
    %c6_i32 = arith.constant 6 : i32
    %43 = arith.addi %0, %c6_i32 : i32
    %44 = arith.index_cast %43 : i32 to index
    %45 = memref.load %arg2[%44] : memref<34xi32, #tpu.memory_space<smem>>
    %c0_17 = arith.constant 0 : index
    %c0_18 = arith.constant 0 : index
    %46 = arith.index_cast %45 : i32 to index
    %c0_19 = arith.constant 0 : index
    %47 = vector.load %arg3[%c0_17, %c0_18, %46, %c0_19] : memref<1x4x16x16xf32, #tpu.memory_space<vmem>>, vector<1x4x1x16xf32>
    %48 = vector.shape_cast %47 : vector<1x4x1x16xf32> to vector<4x1x16xf32>
    %49 = vector.shape_cast %48 : vector<4x1x16xf32> to vector<4x16xf32>
    %c7_i32 = arith.constant 7 : i32
    %50 = arith.addi %0, %c7_i32 : i32
    %51 = arith.index_cast %50 : i32 to index
    %52 = memref.load %arg2[%51] : memref<34xi32, #tpu.memory_space<smem>>
    %c0_20 = arith.constant 0 : index
    %c0_21 = arith.constant 0 : index
    %53 = arith.index_cast %52 : i32 to index
    %c0_22 = arith.constant 0 : index
    %54 = vector.load %arg3[%c0_20, %c0_21, %53, %c0_22] : memref<1x4x16x16xf32, #tpu.memory_space<vmem>>, vector<1x4x1x16xf32>
    %55 = vector.shape_cast %54 : vector<1x4x1x16xf32> to vector<4x1x16xf32>
    %56 = vector.shape_cast %55 : vector<4x1x16xf32> to vector<4x16xf32>
    %c8_i32_23 = arith.constant 8 : i32
    %57 = arith.addi %0, %c8_i32_23 : i32
    %58 = arith.index_cast %57 : i32 to index
    %59 = memref.load %arg2[%58] : memref<34xi32, #tpu.memory_space<smem>>
    %c0_24 = arith.constant 0 : index
    %c0_25 = arith.constant 0 : index
    %60 = arith.index_cast %59 : i32 to index
    %c0_26 = arith.constant 0 : index
    %61 = vector.load %arg3[%c0_24, %c0_25, %60, %c0_26] : memref<1x4x16x16xf32, #tpu.memory_space<vmem>>, vector<1x4x1x16xf32>
    %62 = vector.shape_cast %61 : vector<1x4x1x16xf32> to vector<4x1x16xf32>
    %63 = vector.shape_cast %62 : vector<4x1x16xf32> to vector<4x16xf32>
    %c9_i32 = arith.constant 9 : i32
    %64 = arith.addi %0, %c9_i32 : i32
    %65 = arith.index_cast %64 : i32 to index
    %66 = memref.load %arg2[%65] : memref<34xi32, #tpu.memory_space<smem>>
    %c0_27 = arith.constant 0 : index
    %c0_28 = arith.constant 0 : index
    %67 = arith.index_cast %66 : i32 to index
    %c0_29 = arith.constant 0 : index
    %68 = vector.load %arg3[%c0_27, %c0_28, %67, %c0_29] : memref<1x4x16x16xf32, #tpu.memory_space<vmem>>, vector<1x4x1x16xf32>
    %69 = vector.shape_cast %68 : vector<1x4x1x16xf32> to vector<4x1x16xf32>
    %70 = vector.shape_cast %69 : vector<4x1x16xf32> to vector<4x16xf32>
    %71 = tpu.concatenate %7, %14, %21, %28, %35, %42, %49, %56, %63, %70 in 0 : vector<4x16xf32>, vector<4x16xf32>, vector<4x16xf32>, vector<4x16xf32>, vector<4x16xf32>, vector<4x16xf32>, vector<4x16xf32>, vector<4x16xf32>, vector<4x16xf32>, vector<4x16xf32> -> vector<40x16xf32>
    %c0_30 = arith.constant 0 : index
    %c0_31 = arith.constant 0 : index
    %72 = vector.load %arg4[%c0_30, %c0_31] : memref<16x96xf32, #tpu.memory_space<vmem>>, vector<16x96xf32>
    %cst = arith.constant dense<0.000000e+00> : vector<40x96xf32>
    %73 = tpu.matmul %71, %72, %cst {dimension_numbers = #tpu.dot_dimension_numbers<[1], [0], [0], [1], [0, 0, 1, 1], [], []>, precision = #tpu.contract_precision<fp32>} : vector<40x16xf32>, vector<16x96xf32>, vector<40x96xf32> -> vector<40x96xf32>
    %74 = vector.extract_strided_slice %73 {offsets = [0, 0], sizes = [40, 32], strides = [1, 1]} : vector<40x96xf32> to vector<40x32xf32>
    %75 = vector.extract_strided_slice %73 {offsets = [0, 32], sizes = [40, 32], strides = [1, 1]} : vector<40x96xf32> to vector<40x32xf32>
    %76 = vector.extract_strided_slice %73 {offsets = [0, 64], sizes = [40, 32], strides = [1, 1]} : vector<40x96xf32> to vector<40x32xf32>
    %77 = tpu.concatenate %74, %75, %76 in 0 : vector<40x32xf32>, vector<40x32xf32>, vector<40x32xf32> -> vector<120x32xf32>
    %c0_32 = arith.constant 0 : index
    %c0_33 = arith.constant 0 : index
    %78 = vector.load %arg5[%c0_32, %c0_33] : memref<64x120xf32, #tpu.memory_space<vmem>>, vector<64x120xf32>
    %cst_34 = arith.constant dense<0.000000e+00> : vector<64x32xf32>
    %79 = tpu.matmul %78, %77, %cst_34 {dimension_numbers = #tpu.dot_dimension_numbers<[1], [0], [0], [1], [0, 0, 1, 1], [], []>} : vector<64x120xf32>, vector<120x32xf32>, vector<64x32xf32> -> vector<64x32xf32>
    %c0_35 = arith.constant 0 : index
    %c0_36 = arith.constant 0 : index
    %80 = vector.load %arg6[%c0_35, %c0_36] : memref<64x1xf32, #tpu.memory_space<vmem>>, vector<64x1xf32>
    %81 = vector.broadcast %80 : vector<64x1xf32> to vector<64x32xf32>
    %82 = arith.addf %79, %81 : vector<64x32xf32>
    %cst_37 = arith.constant 0.000000e+00 : f32
    %83 = vector.broadcast %cst_37 : f32 to vector<64x32xf32>
    %84 = arith.maximumf %82, %83 : vector<64x32xf32>
    %85 = vector.shape_cast %84 : vector<64x32xf32> to vector<8x8x32xf32>
    %c0_38 = arith.constant 0 : index
    %c0_39 = arith.constant 0 : index
    %c0_40 = arith.constant 0 : index
    %c0_41 = arith.constant 0 : index
    %86 = vector.load %arg7[%c0_38, %c0_39, %c0_40, %c0_41] : memref<1x8x8x32xf32, #tpu.memory_space<vmem>>, vector<1x8x8x32xf32>
    %87 = vector.shape_cast %86 : vector<1x8x8x32xf32> to vector<8x8x32xf32>
    %88 = vector.shape_cast %85 : vector<8x8x32xf32> to vector<1x8x8x32xf32>
    tpu.vector_store %arg7[%c0_38, %c0_39, %c0_40, %c0_41], %88 {strides = array<i32>} : memref<1x8x8x32xf32, #tpu.memory_space<vmem>>, vector<1x8x8x32xf32>,
    return
  }
  func.func @transform_0(%arg0: i32, %arg1: i32, %arg2: memref<34xi32, #tpu.memory_space<smem>>) -> (i32, i32, i32, i32) {
    %c0_i32 = arith.constant 0 : i32
    %c0_i32_0 = arith.constant 0 : i32
    %c0_i32_1 = arith.constant 0 : i32
    %c0_i32_2 = arith.constant 0 : i32
    return %arg0, %c0_i32, %c0_i32_0, %c0_i32_1 : i32, i32, i32, i32
  }
  func.func @transform_1(%arg0: i32, %arg1: i32, %arg2: memref<34xi32, #tpu.memory_space<smem>>) -> (i32, i32) {
    %c0_i32 = arith.constant 0 : i32
    %c0_i32_0 = arith.constant 0 : i32
    %c0_i32_1 = arith.constant 0 : i32
    return %c0_i32, %c0_i32_0 : i32, i32
  }
  func.func @transform_2(%arg0: i32, %arg1: i32, %arg2: memref<34xi32, #tpu.memory_space<smem>>) -> (i32, i32) {
    %c0_i32 = arith.constant 0 : i32
    %c0_i32_0 = arith.constant 0 : i32
    %c0_i32_1 = arith.constant 0 : i32
    return %c0_i32, %c0_i32_0 : i32, i32
  }
  func.func @transform_3(%arg0: i32, %arg1: i32, %arg2: memref<34xi32, #tpu.memory_space<smem>>) -> (i32, i32) {
    %c0_i32 = arith.constant 0 : i32
    %c0_i32_0 = arith.constant 0 : i32
    %c0_i32_1 = arith.constant 0 : i32
    return %c0_i32, %c0_i32_0 : i32, i32
  }
  func.func @transform_4(%arg0: i32, %arg1: i32, %arg2: memref<34xi32, #tpu.memory_space<smem>>) -> (i32, i32, i32, i32) {
    %c0_i32 = arith.constant 0 : i32
    %c0_i32_0 = arith.constant 0 : i32
    %c0_i32_1 = arith.constant 0 : i32
    return %arg0, %c0_i32, %arg1, %c0_i32_0 : i32, i32, i32, i32
  }
}

</mosaic_0001>

<llo_original>
// kernel: tpu_custom_call.1
$region0: #{tpu_custom_call.1}
  #allocation0 [shape = 'u32[]', space=smem, size = 0x4, offset = 0x4, fixed_abs, tag = 'smem constant byte address 0x4 - core index']
  #allocation1 [shape = 'u32[144,128]{1,0:T(1,128)}', space=vmem, size = 0x12000, scoped, tag = 'internal scratch']
  #allocation2 [shape = 's32[1]{0}', space=sflag, size = 0x4, scoped, tag = 'scoped memory for tpu_custom_call.1']
  #allocation3 [shape = 'u8[512]{0}', space=smem, size = 0x200, scoped, tag = 'prefetched SMEM operand 0']
  %s0 = inlined_call_operand.vmem [shape: s32[34], index: 0, kind: input, shape index: {}]
  %s1 = inlined_call_operand.hbm [shape: f32[2,4,16,16], index: 1, kind: input, shape index: {}]
  %s2 = inlined_call_operand.hbm [shape: f32[16,96], index: 2, kind: input, shape index: {}]
  %s3 = inlined_call_operand.vmem [shape: f32[64,120], index: 3, kind: input, shape index: {}]
  %s4 = inlined_call_operand.vmem [shape: f32[64,1], index: 4, kind: input, shape index: {}]
  %s5 = inlined_call_operand.hbm [shape: f32[2,8,32,32], index: 5, kind: output, shape index: {}]
  %s6 = sld [smem:[#allocation0]]
  $region57: #{tpu_custom_call.1} parent=0
    _
  %s8 = ssub.s32 1, %s6
  %s9 = scalar_select 0, %s8, %s6
  %s10 = sshll.u32 %s0, 4
  %s11 = int_to_ptr.vmem [resolvable:$true] %s10
  %13 = dma.vmem_to_smem %s11, 16, [#allocation3], [#allocation2]
  %14 = dma.done [#allocation2], 16
  %15 = sfence
  $region1: #{tpu_custom_call.1} parent=0
    #allocation4 [shape = 'u8[65536]{0}', space=vmem, size = 0x10000, scoped, tag = 'input window, operand 1']
    #allocation5 [shape = 's32[2]{0}', space=sflag, size = 0x8, scoped, tag = 'scoped memory for tpu_custom_call.1']
    #allocation6 [shape = 's32[2]{0}', space=sflag, size = 0x8, scoped, tag = 'scoped memory for tpu_custom_call.1']
    #allocation7 [shape = 'u8[8192]{0}', space=vmem, size = 0x2000, scoped, tag = 'input window, operand 2, single buffered']
    #allocation8 [shape = 's32[1]{0}', space=sflag, size = 0x4, scoped, tag = 'scoped memory for tpu_custom_call.1']
    #allocation9 [shape = 'u8[65536]{0}', space=vmem, size = 0x10000, scoped, tag = 'output window, operand 0']
    %16 = vsyncpa [#allocation5], 0
    %s17 = scalar_lea.sflag [#allocation5], 1
    %18 = vsyncpa %s17, 0
    %19 = vsyncpa [#allocation8], 0
    %20 = vsyncpa [#allocation6], 0
    %s21 = scalar_lea.sflag [#allocation6], 1
    %22 = vsyncpa %s21, 0
    loop: start=0, step=1, limit=10
    $region2: #{tpu_custom_call.1} parent=1 // loop_pre_header
      _
    $region3: #{tpu_custom_call.1} parent=1 // loop_header
      %s24 = sphi 0, %s28
      %p25 = scmp.ge.s32.totalorder %s24, 10
      %s31 = sphi 0, %s43
      %s32 = sphi 0, %s39
      %s33 = sphi 0, %s31
      %s34 = sphi 0, %s32
      %s35 = sphi 0, %s33
      %s36 = sphi 0, %s34
      %s46 = sphi 0, %s48
      %s49 = sphi 0, %s46
      %s50 = sphi 0, %s49
      %s66 = sphi 0, %s50
      %s70 = sphi 0, %s70
      %s72 = sphi 0, %s70
      %s73 = sphi 0, %s72
      %s87 = sphi 0, %s73
      %s91 = sphi 0, %s91
      %s93 = sphi 0, %s91
      %s94 = sphi 0, %s93
      %s108 = sphi 0, %s94
      %s112 = sphi 0, %s112
      %s114 = sphi 0, %s112
      %s115 = sphi 0, %s114
      %s129 = sphi 0, %s115
      %s137 = sphi 0, %s139
      %s140 = sphi 0, %s137
      %s141 = sphi 0, %s140
      %s157 = sphi 0, %s141
    $region4: #{tpu_custom_call.1} parent=1 // loop_header_branch
      %27 = sbr.rel (%p25) target = $region8
    $region5: #{tpu_custom_call.1} parent=1 // loop_body
      %s29 = ssub.s32 %s24, 1
      %s30 = ssub.s32 %s24, 2
      %s37 = sadd.s32 1, %s32
      %p38 = scmp.ge.s32.totalorder %s37, 4
      %s39 = scalar_select %p38, 0, %s37
      %s40 = sadd.s32 1, %s31
      %s41 = scalar_select %p38, %s40, %s31
      %p42 = scmp.ge.s32.totalorder %s41, 2
      %s43 = scalar_select %p42, 0, %s41
      %s44 = ssub.s32 %s31, %s43
      %p45 = scmp.eq.s32.totalorder %s44, 0
      %s47 = sadd.s32 %s46, 1
      %s48 = scalar_select %p45, %s46, %s47
      %p51 = pneg %p45
      %p52 = scmp.eq.s32.totalorder %s24, 7
      %p53 = por %p51, %p52
      %p54 = scmp.ne.s32.totalorder %s46, %s49
      %p55 = scmp.eq.s32.totalorder %s24, 0
      %p56 = por %p54, %p55
      %p57 = scmp.ne.s32.totalorder %s46, %s49
      %p58 = scmp.eq.s32.totalorder %s29, 7
      %p59 = por %p57, %p58
      %p60 = scmp.ne.s32.totalorder %s49, %s50
      %p61 = scmp.eq.s32.totalorder %s29, 0
      %p62 = por %p60, %p61
      %p63 = scmp.ne.s32.totalorder %s49, %s50
      %p64 = scmp.eq.s32.totalorder %s30, 7
      %p65 = por %p63, %p64
      %p67 = scmp.ne.s32.totalorder %s50, %s66
      %p68 = scmp.eq.s32.totalorder %s30, 0
      %p69 = por %p67, %p68
      %s71 = sadd.s32 %s70, 1
      %p74 = scmp.eq.s32.totalorder %s24, 7
      %p75 = scmp.ne.s32.totalorder %s70, %s72
      %p76 = scmp.eq.s32.totalorder %s24, 0
      %p77 = por %p75, %p76
      %p78 = scmp.ne.s32.totalorder %s70, %s72
      %p79 = scmp.eq.s32.totalorder %s29, 7
      %p80 = por %p78, %p79
      %p81 = scmp.ne.s32.totalorder %s72, %s73
      %p82 = scmp.eq.s32.totalorder %s29, 0
      %p83 = por %p81, %p82
      %p84 = scmp.ne.s32.totalorder %s72, %s73
      %p85 = scmp.eq.s32.totalorder %s30, 7
      %p86 = por %p84, %p85
      %p88 = scmp.ne.s32.totalorder %s73, %s87
      %p89 = scmp.eq.s32.totalorder %s30, 0
      %p90 = por %p88, %p89
      %s92 = sadd.s32 %s91, 1
      %p95 = scmp.eq.s32.totalorder %s24, 7
      %p96 = scmp.ne.s32.totalorder %s91, %s93
      %p97 = scmp.eq.s32.totalorder %s24, 0
      %p98 = por %p96, %p97
      %p99 = scmp.ne.s32.totalorder %s91, %s93
      %p100 = scmp.eq.s32.totalorder %s29, 7
      %p101 = por %p99, %p100
      %p102 = scmp.ne.s32.totalorder %s93, %s94
      %p103 = scmp.eq.s32.totalorder %s29, 0
      %p104 = por %p102, %p103
      %p105 = scmp.ne.s32.totalorder %s93, %s94
      %p106 = scmp.eq.s32.totalorder %s30, 7
      %p107 = por %p105, %p106
      %p109 = scmp.ne.s32.totalorder %s94, %s108
      %p110 = scmp.eq.s32.totalorder %s30, 0
      %p111 = por %p109, %p110
      %s113 = sadd.s32 %s112, 1
      %p116 = scmp.eq.s32.totalorder %s24, 7
      %p117 = scmp.ne.s32.totalorder %s112, %s114
      %p118 = scmp.eq.s32.totalorder %s24, 0
      %p119 = por %p117, %p118
      %p120 = scmp.ne.s32.totalorder %s112, %s114
      %p121 = scmp.eq.s32.totalorder %s29, 7
      %p122 = por %p120, %p121
      %p123 = scmp.ne.s32.totalorder %s114, %s115
      %p124 = scmp.eq.s32.totalorder %s29, 0
      %p125 = por %p123, %p124
      %p126 = scmp.ne.s32.totalorder %s114, %s115
      %p127 = scmp.eq.s32.totalorder %s30, 7
      %p128 = por %p126, %p127
      %p130 = scmp.ne.s32.totalorder %s115, %s129
      %p131 = scmp.eq.s32.totalorder %s30, 0
      %p132 = por %p130, %p131
      %s133 = ssub.s32 %s31, %s43
      %s134 = ssub.s32 %s32, %s39
      %s135 = sor.u32 %s133, %s134
      %p136 = scmp.eq.s32.totalorder %s135, 0
      %s138 = sadd.s32 %s137, 1
      %s139 = scalar_select %p136, %s137, %s138
      %p142 = pneg %p136
      %p143 = scmp.eq.s32.totalorder %s24, 7
      %p144 = por %p142, %p143
      %p145 = scmp.ne.s32.totalorder %s137, %s140
      %p146 = scmp.eq.s32.totalorder %s24, 0
      %p147 = por %p145, %p146
      %p148 = scmp.ne.s32.totalorder %s137, %s140
      %p149 = scmp.eq.s32.totalorder %s29, 7
      %p150 = por %p148, %p149
      %p151 = scmp.ne.s32.totalorder %s140, %s141
      %p152 = scmp.eq.s32.totalorder %s29, 0
      %p153 = por %p151, %p152
      %p154 = scmp.ne.s32.totalorder %s140, %s141
      %p155 = scmp.eq.s32.totalorder %s30, 7
      %p156 = por %p154, %p155
      %p158 = scmp.ne.s32.totalorder %s141, %s157
      %p159 = scmp.eq.s32.totalorder %s30, 0
      %p160 = por %p158, %p159
      %p161 = scmp.le.s32.totalorder 1, %s24
      %p162 = scmp.lt.s32.totalorder %s24, 9
      %p163 = pnand %p161, %p162
      %p164 = pneg %p163
      // Predicated region
      $region9: #{tpu_custom_call.1} parent=5 // pred_check
        _
      $region10: #{tpu_custom_call.1} parent=5 // pred_check_branch
        %166 = sbr.rel (%p163) target = $region12
      $region11: #{tpu_custom_call.1} parent=5 // pred_region
        %s167 = ssub.s32 %s24, 1
        // Predicated region
        $region13: #{tpu_custom_call.1} parent=11 // pred_check
          %p168 = pneg %p83
        $region14: #{tpu_custom_call.1} parent=11 // pred_check_branch
          %170 = sbr.rel (%p168) target = $region16
        $region15: #{tpu_custom_call.1} parent=11 // pred_region
          %s172 = ssub.s32 256, 256
          %173 = vsyncadd [#allocation8], %s172
          %s174 = sshll.u32 [#allocation7], 4
          %s175 = int_to_ptr.vmem [resolvable:$true] %s174
          %180 = dma.hbm_to_vmem [thread:$0]  %s2, 256, %s175, [#allocation8], 128, 128, 8
        $region16: #{tpu_custom_call.1} parent=11 // pred_fallthru
          _
        // Predicated region
        $region17: #{tpu_custom_call.1} parent=11 // pred_check
          %p181 = pneg %p104
        $region18: #{tpu_custom_call.1} parent=11 // pred_check_branch
          %183 = sbr.rel (%p181) target = $region20
        $region19: #{tpu_custom_call.1} parent=11 // pred_region
          _
        $region20: #{tpu_custom_call.1} parent=11 // pred_fallthru
          _
        // Predicated region
        $region21: #{tpu_custom_call.1} parent=11 // pred_check
          %p184 = pneg %p125
        $region22: #{tpu_custom_call.1} parent=11 // pred_check_branch
          %186 = sbr.rel (%p184) target = $region24
        $region23: #{tpu_custom_call.1} parent=11 // pred_region
          _
        $region24: #{tpu_custom_call.1} parent=11 // pred_fallthru
          _
      $region12: #{tpu_custom_call.1} parent=5 // pred_fallthru
        _
      %p187 = scmp.lt.s32.totalorder %s24, 8
      // Predicated region
      $region25: #{tpu_custom_call.1} parent=5 // pred_check
        %p188 = pneg %p187
      $region26: #{tpu_custom_call.1} parent=5 // pred_check_branch
        %190 = sbr.rel (%p188) target = $region28
      $region27: #{tpu_custom_call.1} parent=5 // pred_region
        // Predicated region
        $region29: #{tpu_custom_call.1} parent=27 // pred_check
          %p191 = pneg %p56
        $region30: #{tpu_custom_call.1} parent=27 // pred_check_branch
          %193 = sbr.rel (%p191) target = $region32
        $region31: #{tpu_custom_call.1} parent=27 // pred_region
          %s194 = sand.u32 %s46, 1
          %s195 = scalar_lea.sflag [#allocation5], %s194
          %s196 = sand.u32 %s46, 1
          %s197 = smul.addr %s196, 64
          %s198 = scalar_lea.vmem [#allocation4], %s197
          %s200 = ssub.s32 1024, 1024
          %201 = vsyncadd %s195, %s200
          %s202 = smul.addr %s31, 8
          %s203 = smul.addr %s202, 128
          %s204 = scalar_lea.hbm %s1, %s203
          %s205 = sshll.u32 %s198, 4
          %s206 = int_to_ptr.vmem [resolvable:$true] %s205
          %211 = dma.hbm_to_vmem [thread:$0]  %s204, 1024, %s206, %s195, 128, 128, 8
        $region32: #{tpu_custom_call.1} parent=27 // pred_fallthru
          _
      $region28: #{tpu_custom_call.1} parent=5 // pred_fallthru
        _
      %p212 = scmp.le.s32.totalorder 1, %s24
      %p213 = scmp.lt.s32.totalorder %s24, 9
      %p214 = pnand %p212, %p213
      %p215 = pneg %p214
      // Predicated region
      $region33: #{tpu_custom_call.1} parent=5 // pred_check
        _
      $region34: #{tpu_custom_call.1} parent=5 // pred_check_branch
        %217 = sbr.rel (%p214) target = $region36
      $region35: #{tpu_custom_call.1} parent=5 // pred_region
        %s218 = ssub.s32 %s24, 1
        %s219 = sand.u32 %s49, 1
        %s220 = scalar_lea.sflag [#allocation5], %s219
        %s221 = sand.u32 %s49, 1
        %s222 = smul.addr %s221, 64
        %s223 = scalar_lea.vmem [#allocation4], %s222
        // Predicated region
        $region37: #{tpu_custom_call.1} parent=35 // pred_check
          %p224 = pneg %p62
        $region38: #{tpu_custom_call.1} parent=35 // pred_check_branch
          %226 = sbr.rel (%p224) target = $region40
        $region39: #{tpu_custom_call.1} parent=35 // pred_region
          %227 = dma.done %s220, 1024
        $region40: #{tpu_custom_call.1} parent=35 // pred_fallthru
          _
        // Predicated region
        $region41: #{tpu_custom_call.1} parent=35 // pred_check
          %p228 = pneg %p83
        $region42: #{tpu_custom_call.1} parent=35 // pred_check_branch
          %230 = sbr.rel (%p228) target = $region44
        $region43: #{tpu_custom_call.1} parent=35 // pred_region
          %231 = dma.done [#allocation8], 256
        $region44: #{tpu_custom_call.1} parent=35 // pred_fallthru
          _
        %s232 = sand.u32 %s49, 1
        %s233 = scalar_lea.sflag [#allocation5], %s232
        %s234 = sand.u32 %s49, 1
        %s235 = smul.addr %s234, 64
        %s236 = scalar_lea.vmem [#allocation4], %s235
        %p237 = pneg %p62
        %p238 = pneg %p59
        %p239 = pneg %p83
        %p240 = pneg %p80
        %p241 = pneg %p104
        %p242 = pneg %p101
        %p243 = pneg %p125
        %p244 = pneg %p122
        %p245 = pneg %p153
        %p246 = pneg %p150
        %s247 = sand.u32 %s140, 1
        %s248 = scalar_lea.sflag [#allocation6], %s247
        %s249 = sand.u32 %s140, 1
        %s250 = smul.addr %s249, 64
        %s251 = scalar_lea.vmem [#allocation9], %s250
        %s252 = smul.u32 %s34, 8
        %s253 = sld [smem:[#allocation3 + %s252]]
        %s254 = scalar_lea.vmem %s223, %s253 [#allocation4]
        %v255 = vld [vmem:[%s254] sm:$0x1]
        %v256 = vld [vmem:[%s254 + $0x10] sm:$0x1]
        %v257 = vld [vmem:[%s254 + $0x20] sm:$0x1]
        %v258 = vld [vmem:[%s254 + $0x30] sm:$0x1]
        %s259 = sadd.s32 %s252, 1
        %s260 = sld [smem:[#allocation3 + %s259]]
        %s261 = scalar_lea.vmem %s223, %s260 [#allocation4]
        %v262 = vld [vmem:[%s261] sm:$0x1]
        %v263 = vld [vmem:[%s261 + $0x10] sm:$0x1]
        %v264 = vld [vmem:[%s261 + $0x20] sm:$0x1]
        %v265 = vld [vmem:[%s261 + $0x30] sm:$0x1]
        %s266 = sadd.s32 %s252, 2
        %s267 = sld [smem:[#allocation3 + %s266]]
        %s268 = scalar_lea.vmem %s223, %s267 [#allocation4]
        %v269 = vld [vmem:[%s268] sm:$0x1]
        %v270 = vld [vmem:[%s268 + $0x10] sm:$0x1]
        %v271 = vld [vmem:[%s268 + $0x20] sm:$0x1]
        %v272 = vld [vmem:[%s268 + $0x30] sm:$0x1]
        %s273 = sadd.s32 %s252, 3
        %s274 = sld [smem:[#allocation3 + %s273]]
        %s275 = scalar_lea.vmem %s223, %s274 [#allocation4]
        %v276 = vld [vmem:[%s275] sm:$0x1]
        %v277 = vld [vmem:[%s275 + $0x10] sm:$0x1]
        %v278 = vld [vmem:[%s275 + $0x20] sm:$0x1]
        %v279 = vld [vmem:[%s275 + $0x30] sm:$0x1]
        %s280 = sadd.s32 %s252, 4
        %s281 = sld [smem:[#allocation3 + %s280]]
        %s282 = scalar_lea.vmem %s223, %s281 [#allocation4]
        %v283 = vld [vmem:[%s282] sm:$0x1]
        %v284 = vld [vmem:[%s282 + $0x10] sm:$0x1]
        %v285 = vld [vmem:[%s282 + $0x20] sm:$0x1]
        %v286 = vld [vmem:[%s282 + $0x30] sm:$0x1]
        %s287 = sadd.s32 %s252, 5
        %s288 = sld [smem:[#allocation3 + %s287]]
        %s289 = scalar_lea.vmem %s223, %s288 [#allocation4]
        %v290 = vld [vmem:[%s289] sm:$0x1]
        %v291 = vld [vmem:[%s289 + $0x10] sm:$0x1]
        %v292 = vld [vmem:[%s289 + $0x20] sm:$0x1]
        %v293 = vld [vmem:[%s289 + $0x30] sm:$0x1]
        %s294 = sadd.s32 %s252, 6
        %s295 = sld [smem:[#allocation3 + %s294]]
        %s296 = scalar_lea.vmem %s223, %s295 [#allocation4]
        %v297 = vld [vmem:[%s296] sm:$0x1]
        %v298 = vld [vmem:[%s296 + $0x10] sm:$0x1]
        %v299 = vld [vmem:[%s296 + $0x20] sm:$0x1]
        %v300 = vld [vmem:[%s296 + $0x30] sm:$0x1]
        %s301 = sadd.s32 %s252, 7
        %s302 = sld [smem:[#allocation3 + %s301]]
        %s303 = scalar_lea.vmem %s223, %s302 [#allocation4]
        %v304 = vld [vmem:[%s303] sm:$0x1]
        %v305 = vld [vmem:[%s303 + $0x10] sm:$0x1]
        %v306 = vld [vmem:[%s303 + $0x20] sm:$0x1]
        %v307 = vld [vmem:[%s303 + $0x30] sm:$0x1]
        %s308 = sadd.s32 %s252, 8
        %s309 = sld [smem:[#allocation3 + %s308]]
        %s310 = scalar_lea.vmem %s223, %s309 [#allocation4]
        %v311 = vld [vmem:[%s310] sm:$0x1]
        %v312 = vld [vmem:[%s310 + $0x10] sm:$0x1]
        %v313 = vld [vmem:[%s310 + $0x20] sm:$0x1]
        %v314 = vld [vmem:[%s310 + $0x30] sm:$0x1]
        %s315 = sadd.s32 %s252, 9
        %s316 = sld [smem:[#allocation3 + %s315]]
        %s317 = scalar_lea.vmem %s223, %s316 [#allocation4]
        %v318 = vld [vmem:[%s317] sm:$0x1]
        %v319 = vld [vmem:[%s317 + $0x10] sm:$0x1]
        %v320 = vld [vmem:[%s317 + $0x20] sm:$0x1]
        %v321 = vld [vmem:[%s317 + $0x30] sm:$0x1]
        %v326 = vrot.slane %v256, 7
        %vm327 = vcmask 1041409
        %v328 = vsel %vm327, %v326, %v255
        %v329 = vrot.slane %v257, 6
        %vm330 = vcmask 1042434
        %v331 = vsel %vm330, %v329, %v328
        %v332 = vrot.slane %v258, 5
        %vm333 = vcmask 1043459
        %v334 = vsel %vm333, %v332, %v331
        %v340 = vrot.slane %v262, 4
        %v341 = vrot.slane %v263, 3
        %vm342 = vcmask 1045509
        %v343 = vsel %vm342, %v341, %v340
        %v344 = vrot.slane %v264, 2
        %vm345 = vcmask 1046534
        %v346 = vsel %vm345, %v344, %v343
        %v347 = vrot.slane %v265, 1
        %vm348 = vcmask 1047559
        %v349 = vsel %vm348, %v347, %v346
        %v355 = vrot.slane %v270, 7
        %v356 = vsel %vm327, %v355, %v269
        %v357 = vrot.slane %v271, 6
        %v358 = vsel %vm330, %v357, %v356
        %v359 = vrot.slane %v272, 5
        %v360 = vsel %vm333, %v359, %v358
        %v366 = vrot.slane %v276, 4
        %v367 = vrot.slane %v277, 3
        %v368 = vsel %vm342, %v367, %v366
        %v369 = vrot.slane %v278, 2
        %v370 = vsel %vm345, %v369, %v368
        %v371 = vrot.slane %v279, 1
        %v372 = vsel %vm348, %v371, %v370
        %v378 = vrot.slane %v284, 7
        %v379 = vsel %vm327, %v378, %v283
        %v380 = vrot.slane %v285, 6
        %v381 = vsel %vm330, %v380, %v379
        %v382 = vrot.slane %v286, 5
        %v383 = vsel %vm333, %v382, %v381
        %v389 = vrot.slane %v290, 4
        %v390 = vrot.slane %v291, 3
        %v391 = vsel %vm342, %v390, %v389
        %v392 = vrot.slane %v292, 2
        %v393 = vsel %vm345, %v392, %v391
        %v394 = vrot.slane %v293, 1
        %v395 = vsel %vm348, %v394, %v393
        %v401 = vrot.slane %v298, 7
        %v402 = vsel %vm327, %v401, %v297
        %v403 = vrot.slane %v299, 6
        %v404 = vsel %vm330, %v403, %v402
        %v405 = vrot.slane %v300, 5
        %v406 = vsel %vm333, %v405, %v404
        %v412 = vrot.slane %v304, 4
        %v413 = vrot.slane %v305, 3
        %v414 = vsel %vm342, %v413, %v412
        %v415 = vrot.slane %v306, 2
        %v416 = vsel %vm345, %v415, %v414
        %v417 = vrot.slane %v307, 1
        %v418 = vsel %vm348, %v417, %v416
        %v424 = vrot.slane %v312, 7
        %v425 = vsel %vm327, %v424, %v311
        %v426 = vrot.slane %v313, 6
        %v427 = vsel %vm330, %v426, %v425
        %v428 = vrot.slane %v314, 5
        %v429 = vsel %vm333, %v428, %v427
        %v435 = vrot.slane %v318, 4
        %v436 = vrot.slane %v319, 3
        %v437 = vsel %vm342, %v436, %v435
        %v438 = vrot.slane %v320, 2
        %v439 = vsel %vm345, %v438, %v437
        %v440 = vrot.slane %v321, 1
        %v441 = vsel %vm348, %v440, %v439
        %vm443 = vcmask 1043456
        %v444 = vsel %vm443, %v334, %v349
        %v445 = vsel %vm443, %v360, %v372
        %v446 = vsel %vm443, %v383, %v395
        %v447 = vsel %vm443, %v406, %v418
        %v448 = vsel %vm443, %v429, %v441
        %v449 = vld [vmem:[#allocation7] sm:$0xff]
        %v450 = vld [vmem:[#allocation7 + $0x8] sm:$0xff]
        %vm451 = vcmask 130048
        %v453 = vsel %vm451, %v444, 0
        %v456 = vsel %vm451, %v445, 0
        %v459 = vsel %vm451, %v446, 0
        %v462 = vsel %vm451, %v447, 0
        %v465 = vsel %vm451, %v448, 0
        %467 = vmatprep.subr.mxu0 0.0
        %v468 = vand.u32 %v449, 4294901760
        %469 = vmatpush1.msra.mxu0 %v468
        %470 = vmatprep.subr.mxu0 0.0
        %v471 = vand.u32 %v450, 4294901760
        %472 = vmatpush1.msra.mxu0 %v471
        %473 = vmatprep.subr.mxu0 0.0
        %474 = vmatpush1.msra.mxu0 0.0
        %475 = vmatprep.subr.mxu0 0.0
        %476 = vmatpush1.msra.mxu0 0.0
        %477 = vmatprep.subr.mxu0 0.0
        %478 = vmatpush1.msra.mxu0 0.0
        %479 = vmatprep.subr.mxu0 0.0
        %480 = vmatpush1.msra.mxu0 0.0
        %481 = vmatprep.subr.mxu0 0.0
        %482 = vmatpush1.msra.mxu0 0.0
        %483 = vmatprep.subr.mxu0 0.0
        %484 = vmatpush1.msra.mxu0 0.0
        %485 = vmatprep.subr.mxu0 0.0
        %486 = vmatpush1.msra.mxu0 0.0
        %487 = vmatprep.subr.mxu0 0.0
        %488 = vmatpush1.msra.mxu0 0.0
        %489 = vmatprep.subr.mxu0 0.0
        %490 = vmatpush1.msra.mxu0 0.0
        %491 = vmatprep.subr.mxu0 0.0
        %492 = vmatpush1.msra.mxu0 0.0
        %493 = vmatprep.subr.mxu0 0.0
        %494 = vmatpush1.msra.mxu0 0.0
        %495 = vmatprep.subr.mxu0 0.0
        %496 = vmatpush1.msra.mxu0 0.0
        %497 = vmatprep.subr.mxu0 0.0
        %498 = vmatpush1.msra.mxu0 0.0
        %499 = vmatprep.subr.mxu0 0.0
        %500 = vmatpush1.msra.mxu0 0.0
        %501 = vmatprep.subr.mxu0 0.0
        %502 = vmatpush1.msra.mxu0 0.0
        %503 = vmatprep.subr.mxu0 0.0
        %504 = vmatpush1.msra.mxu0 0.0
        %505 = vmatprep.subr.mxu0 0.0
        %506 = vmatpush1.msra.mxu0 0.0
        %507 = vmatprep.subr.mxu0 0.0
        %508 = vmatpush1.msra.mxu0 0.0
        %509 = vmatprep.subr.mxu0 0.0
        %510 = vmatpush1.msra.mxu0 0.0
        %511 = vmatprep.subr.mxu0 0.0
        %512 = vmatpush1.msra.mxu0 0.0
        %513 = vmatprep.subr.mxu0 0.0
        %514 = vmatpush1.msra.mxu0 0.0
        %515 = vmatprep.subr.mxu0 0.0
        %516 = vmatpush1.msra.mxu0 0.0
        %517 = vmatprep.subr.mxu0 0.0
        %518 = vmatpush1.msra.mxu0 0.0
        %519 = vmatprep.subr.mxu0 0.0
        %520 = vmatpush1.msra.mxu0 0.0
        %521 = vmatprep.subr.mxu0 0.0
        %522 = vmatpush1.msra.mxu0 0.0
        %523 = vmatprep.subr.mxu0 0.0
        %524 = vmatpush1.msra.mxu0 0.0
        %525 = vmatprep.subr.mxu0 0.0
        %526 = vmatpush1.msra.mxu0 0.0
        %527 = vmatprep.subr.mxu0 0.0
        %528 = vmatpush1.msra.mxu0 0.0
        %529 = vmatprep.subr.mxu0 0.0
        %530 = vmatpush1.msra.mxu0 0.0
        %531 = vmatprep.subr.mxu0 0.0
        %532 = vmatpush1.msra.mxu0 0.0
        %533 = vmatprep.mubr.f32.mxu0 0.0
        %v534 = vand.u32 %v453, 4294901760
        %v535 = vsub.f32 %v453, %v534
        %v536 = vand.u32 %v535, 4294901760
        %v537 = vsub.f32 %v535, %v536
        %v538 = vand.u32 %v537, 4294901760
        %539 = vmatmul.mubr.f32.gmra.mrb[0].mxu0 %v538
        %v540 = vpop.f32.mrb[0].mxu0
        %v541 = vadd.f32 0.0, %v540
        %v542 = vpop.f32.mrb[0].mxu0
        %543 = vmatprep.mubr.f32.mxu0 0.0
        %v544 = vand.u32 %v456, 4294901760
        %v545 = vsub.f32 %v456, %v544
        %v546 = vand.u32 %v545, 4294901760
        %v547 = vsub.f32 %v545, %v546
        %v548 = vand.u32 %v547, 4294901760
        %549 = vmatmul.mubr.f32.gmra.mrb[0].mxu0 %v548
        %v550 = vpop.f32.mrb[0].mxu0
        %v551 = vadd.f32 0.0, %v550
        %v552 = vpop.f32.mrb[0].mxu0
        %553 = vmatprep.mubr.f32.mxu0 0.0
        %v554 = vand.u32 %v459, 4294901760
        %v555 = vsub.f32 %v459, %v554
        %v556 = vand.u32 %v555, 4294901760
        %v557 = vsub.f32 %v555, %v556
        %v558 = vand.u32 %v557, 4294901760
        %559 = vmatmul.mubr.f32.gmra.mrb[0].mxu0 %v558
        %v560 = vpop.f32.mrb[0].mxu0
        %v561 = vadd.f32 0.0, %v560
        %v562 = vpop.f32.mrb[0].mxu0
        %563 = vmatprep.mubr.f32.mxu0 0.0
        %v564 = vand.u32 %v462, 4294901760
        %v565 = vsub.f32 %v462, %v564
        %v566 = vand.u32 %v565, 4294901760
        %v567 = vsub.f32 %v565, %v566
        %v568 = vand.u32 %v567, 4294901760
        %569 = vmatmul.mubr.f32.gmra.mrb[0].mxu0 %v568
        %v570 = vpop.f32.mrb[0].mxu0
        %v571 = vadd.f32 0.0, %v570
        %v572 = vpop.f32.mrb[0].mxu0
        %573 = vmatprep.mubr.f32.mxu0 0.0
        %v574 = vand.u32 %v465, 4294901760
        %v575 = vsub.f32 %v465, %v574
        %v576 = vand.u32 %v575, 4294901760
        %v577 = vsub.f32 %v575, %v576
        %v578 = vand.u32 %v577, 4294901760
        %579 = vmatmul.mubr.f32.gmra.mrb[0].mxu0 %v578
        %v580 = vpop.f32.mrb[0].mxu0
        %v581 = vadd.f32 0.0, %v580
        %v582 = vpop.f32.mrb[0].mxu0
        %583 = vdwg.mxu0
        %584 = vmatprep.subr.mxu0 0.0
        %v585 = vand.u32 %v449, 4294901760
        %v586 = vsub.f32 %v449, %v585
        %v587 = vand.u32 %v586, 4294901760
        %v588 = vsub.f32 %v586, %v587
        %v589 = vand.u32 %v588, 4294901760
        %590 = vmatpush1.msra.mxu0 %v589
        %591 = vmatprep.subr.mxu0 0.0
        %v592 = vand.u32 %v450, 4294901760
        %v593 = vsub.f32 %v450, %v592
        %v594 = vand.u32 %v593, 4294901760
        %v595 = vsub.f32 %v593, %v594
        %v596 = vand.u32 %v595, 4294901760
        %597 = vmatpush1.msra.mxu0 %v596
        %598 = vmatprep.subr.mxu0 0.0
        %599 = vmatpush1.msra.mxu0 0.0
        %600 = vmatprep.subr.mxu0 0.0
        %601 = vmatpush1.msra.mxu0 0.0
        %602 = vmatprep.subr.mxu0 0.0
        %603 = vmatpush1.msra.mxu0 0.0
        %604 = vmatprep.subr.mxu0 0.0
        %605 = vmatpush1.msra.mxu0 0.0
        %606 = vmatprep.subr.mxu0 0.0
        %607 = vmatpush1.msra.mxu0 0.0
        %608 = vmatprep.subr.mxu0 0.0
        %609 = vmatpush1.msra.mxu0 0.0
        %610 = vmatprep.subr.mxu0 0.0
        %611 = vmatpush1.msra.mxu0 0.0
        %612 = vmatprep.subr.mxu0 0.0
        %613 = vmatpush1.msra.mxu0 0.0
        %614 = vmatprep.subr.mxu0 0.0
        %615 = vmatpush1.msra.mxu0 0.0
        %616 = vmatprep.subr.mxu0 0.0
        %617 = vmatpush1.msra.mxu0 0.0
        %618 = vmatprep.subr.mxu0 0.0
        %619 = vmatpush1.msra.mxu0 0.0
        %620 = vmatprep.subr.mxu0 0.0
        %621 = vmatpush1.msra.mxu0 0.0
        %622 = vmatprep.subr.mxu0 0.0
        %623 = vmatpush1.msra.mxu0 0.0
        %624 = vmatprep.subr.mxu0 0.0
        %625 = vmatpush1.msra.mxu0 0.0
        %626 = vmatprep.subr.mxu0 0.0
        %627 = vmatpush1.msra.mxu0 0.0
        %628 = vmatprep.subr.mxu0 0.0
        %629 = vmatpush1.msra.mxu0 0.0
        %630 = vmatprep.subr.mxu0 0.0
        %631 = vmatpush1.msra.mxu0 0.0
        %632 = vmatprep.subr.mxu0 0.0
        %633 = vmatpush1.msra.mxu0 0.0
        %634 = vmatprep.subr.mxu0 0.0
        %635 = vmatpush1.msra.mxu0 0.0
        %636 = vmatprep.subr.mxu0 0.0
        %637 = vmatpush1.msra.mxu0 0.0
        %638 = vmatprep.subr.mxu0 0.0
        %639 = vmatpush1.msra.mxu0 0.0
        %640 = vmatprep.subr.mxu0 0.0
        %641 = vmatpush1.msra.mxu0 0.0
        %642 = vmatprep.subr.mxu0 0.0
        %643 = vmatpush1.msra.mxu0 0.0
        %644 = vmatprep.subr.mxu0 0.0
        %645 = vmatpush1.msra.mxu0 0.0
        %646 = vmatprep.subr.mxu0 0.0
        %647 = vmatpush1.msra.mxu0 0.0
        %648 = vmatprep.subr.mxu0 0.0
        %649 = vmatpush1.msra.mxu0 0.0
        %650 = vmatprep.subr.mxu0 0.0
        %651 = vmatpush1.msra.mxu0 0.0
        %652 = vmatprep.subr.mxu0 0.0
        %653 = vmatpush1.msra.mxu0 0.0
        %654 = vmatprep.subr.mxu0 0.0
        %655 = vmatpush1.msra.mxu0 0.0
        %656 = vmatprep.subr.mxu0 0.0
        %657 = vmatpush1.msra.mxu0 0.0
        %658 = vmatprep.mubr.f32.mxu0 0.0
        %v659 = vand.u32 %v453, 4294901760
        %660 = vmatmul.mubr.f32.gmra.mrb[0].mxu0 %v659
        %v661 = vpop.f32.mrb[0].mxu0
        %v662 = vadd.f32 %v541, %v661
        %v663 = vpop.f32.mrb[0].mxu0
        %664 = vmatprep.mubr.f32.mxu0 0.0
        %v665 = vand.u32 %v456, 4294901760
        %666 = vmatmul.mubr.f32.gmra.mrb[0].mxu0 %v665
        %v667 = vpop.f32.mrb[0].mxu0
        %v668 = vadd.f32 %v551, %v667
        %v669 = vpop.f32.mrb[0].mxu0
        %670 = vmatprep.mubr.f32.mxu0 0.0
        %v671 = vand.u32 %v459, 4294901760
        %672 = vmatmul.mubr.f32.gmra.mrb[0].mxu0 %v671
        %v673 = vpop.f32.mrb[0].mxu0
        %v674 = vadd.f32 %v561, %v673
        %v675 = vpop.f32.mrb[0].mxu0
        %676 = vmatprep.mubr.f32.mxu0 0.0
        %v677 = vand.u32 %v462, 4294901760
        %678 = vmatmul.mubr.f32.gmra.mrb[0].mxu0 %v677
        %v679 = vpop.f32.mrb[0].mxu0
        %v680 = vadd.f32 %v571, %v679
        %v681 = vpop.f32.mrb[0].mxu0
        %682 = vmatprep.mubr.f32.mxu0 0.0
        %v683 = vand.u32 %v465, 4294901760
        %684 = vmatmul.mubr.f32.gmra.mrb[0].mxu0 %v683
        %v685 = vpop.f32.mrb[0].mxu0
        %v686 = vadd.f32 %v581, %v685
        %v687 = vpop.f32.mrb[0].mxu0
        %688 = vdwg.mxu0
        %689 = vmatprep.subr.mxu0 0.0
        %v690 = vand.u32 %v449, 4294901760
        %v691 = vsub.f32 %v449, %v690
        %692 = vmatpush1.msra.mxu0 %v691
        %693 = vmatprep.subr.mxu0 0.0
        %v694 = vand.u32 %v450, 4294901760
        %v695 = vsub.f32 %v450, %v694
        %696 = vmatpush1.msra.mxu0 %v695
        %697 = vmatprep.subr.mxu0 0.0
        %698 = vmatpush1.msra.mxu0 0.0
        %699 = vmatprep.subr.mxu0 0.0
        %700 = vmatpush1.msra.mxu0 0.0
        %701 = vmatprep.subr.mxu0 0.0
        %702 = vmatpush1.msra.mxu0 0.0
        %703 = vmatprep.subr.mxu0 0.0
        %704 = vmatpush1.msra.mxu0 0.0
        %705 = vmatprep.subr.mxu0 0.0
        %706 = vmatpush1.msra.mxu0 0.0
        %707 = vmatprep.subr.mxu0 0.0
        %708 = vmatpush1.msra.mxu0 0.0
        %709 = vmatprep.subr.mxu0 0.0
        %710 = vmatpush1.msra.mxu0 0.0
        %711 = vmatprep.subr.mxu0 0.0
        %712 = vmatpush1.msra.mxu0 0.0
        %713 = vmatprep.subr.mxu0 0.0
        %714 = vmatpush1.msra.mxu0 0.0
        %715 = vmatprep.subr.mxu0 0.0
        %716 = vmatpush1.msra.mxu0 0.0
        %717 = vmatprep.subr.mxu0 0.0
        %718 = vmatpush1.msra.mxu0 0.0
        %719 = vmatprep.subr.mxu0 0.0
        %720 = vmatpush1.msra.mxu0 0.0
        %721 = vmatprep.subr.mxu0 0.0
        %722 = vmatpush1.msra.mxu0 0.0
        %723 = vmatprep.subr.mxu0 0.0
        %724 = vmatpush1.msra.mxu0 0.0
        %725 = vmatprep.subr.mxu0 0.0
        %726 = vmatpush1.msra.mxu0 0.0
        %727 = vmatprep.subr.mxu0 0.0
        %728 = vmatpush1.msra.mxu0 0.0
        %729 = vmatprep.subr.mxu0 0.0
        %730 = vmatpush1.msra.mxu0 0.0
        %731 = vmatprep.subr.mxu0 0.0
        %732 = vmatpush1.msra.mxu0 0.0
        %733 = vmatprep.subr.mxu0 0.0
        %734 = vmatpush1.msra.mxu0 0.0
        %735 = vmatprep.subr.mxu0 0.0
        %736 = vmatpush1.msra.mxu0 0.0
        %737 = vmatprep.subr.mxu0 0.0
        %738 = vmatpush1.msra.mxu0 0.0
        %739 = vmatprep.subr.mxu0 0.0
        %740 = vmatpush1.msra.mxu0 0.0
        %741 = vmatprep.subr.mxu0 0.0
        %742 = vmatpush1.msra.mxu0 0.0
        %743 = vmatprep.subr.mxu0 0.0
        %744 = vmatpush1.msra.mxu0 0.0
        %745 = vmatprep.subr.mxu0 0.0
        %746 = vmatpush1.msra.mxu0 0.0
        %747 = vmatprep.subr.mxu0 0.0
        %748 = vmatpush1.msra.mxu0 0.0
        %749 = vmatprep.subr.mxu0 0.0
        %750 = vmatpush1.msra.mxu0 0.0
        %751 = vmatprep.subr.mxu0 0.0
        %752 = vmatpush1.msra.mxu0 0.0
        %753 = vmatprep.subr.mxu0 0.0
        %754 = vmatpush1.msra.mxu0 0.0
        %755 = vmatprep.subr.mxu0 0.0
        %756 = vmatpush1.msra.mxu0 0.0
        %757 = vmatprep.mubr.f32.mxu0 0.0
        %v758 = vand.u32 %v453, 4294901760
        %v759 = vsub.f32 %v453, %v758
        %760 = vmatmul.mubr.f32.gmra.mrb[0].mxu0 %v759
        %v761 = vpop.f32.mrb[0].mxu0
        %v762 = vadd.f32 %v662, %v761
        %v763 = vpop.f32.mrb[0].mxu0
        %764 = vmatprep.mubr.f32.mxu0 0.0
        %v765 = vand.u32 %v456, 4294901760
        %v766 = vsub.f32 %v456, %v765
        %767 = vmatmul.mubr.f32.gmra.mrb[0].mxu0 %v766
        %v768 = vpop.f32.mrb[0].mxu0
        %v769 = vadd.f32 %v668, %v768
        %v770 = vpop.f32.mrb[0].mxu0
        %771 = vmatprep.mubr.f32.mxu0 0.0
        %v772 = vand.u32 %v459, 4294901760
        %v773 = vsub.f32 %v459, %v772
        %774 = vmatmul.mubr.f32.gmra.mrb[0].mxu0 %v773
        %v775 = vpop.f32.mrb[0].mxu0
        %v776 = vadd.f32 %v674, %v775
        %v777 = vpop.f32.mrb[0].mxu0
        %778 = vmatprep.mubr.f32.mxu0 0.0
        %v779 = vand.u32 %v462, 4294901760
        %v780 = vsub.f32 %v462, %v779
        %781 = vmatmul.mubr.f32.gmra.mrb[0].mxu0 %v780
        %v782 = vpop.f32.mrb[0].mxu0
        %v783 = vadd.f32 %v680, %v782
        %v784 = vpop.f32.mrb[0].mxu0
        %785 = vmatprep.mubr.f32.mxu0 0.0
        %v786 = vand.u32 %v465, 4294901760
        %v787 = vsub.f32 %v465, %v786
        %788 = vmatmul.mubr.f32.gmra.mrb[0].mxu0 %v787
        %v789 = vpop.f32.mrb[0].mxu0
        %v790 = vadd.f32 %v686, %v789
        %v791 = vpop.f32.mrb[0].mxu0
        %792 = vdwg.mxu0
        %793 = vmatprep.subr.mxu0 0.0
        %v794 = vand.u32 %v449, 4294901760
        %795 = vmatpush1.msra.mxu0 %v794
        %796 = vmatprep.subr.mxu0 0.0
        %v797 = vand.u32 %v450, 4294901760
        %798 = vmatpush1.msra.mxu0 %v797
        %799 = vmatprep.subr.mxu0 0.0
        %800 = vmatpush1.msra.mxu0 0.0
        %801 = vmatprep.subr.mxu0 0.0
        %802 = vmatpush1.msra.mxu0 0.0
        %803 = vmatprep.subr.mxu0 0.0
        %804 = vmatpush1.msra.mxu0 0.0
        %805 = vmatprep.subr.mxu0 0.0
        %806 = vmatpush1.msra.mxu0 0.0
        %807 = vmatprep.subr.mxu0 0.0
        %808 = vmatpush1.msra.mxu0 0.0
        %809 = vmatprep.subr.mxu0 0.0
        %810 = vmatpush1.msra.mxu0 0.0
        %811 = vmatprep.subr.mxu0 0.0
        %812 = vmatpush1.msra.mxu0 0.0
        %813 = vmatprep.subr.mxu0 0.0
        %814 = vmatpush1.msra.mxu0 0.0
        %815 = vmatprep.subr.mxu0 0.0
        %816 = vmatpush1.msra.mxu0 0.0
        %817 = vmatprep.subr.mxu0 0.0
        %818 = vmatpush1.msra.mxu0 0.0
        %819 = vmatprep.subr.mxu0 0.0
        %820 = vmatpush1.msra.mxu0 0.0
        %821 = vmatprep.subr.mxu0 0.0
        %822 = vmatpush1.msra.mxu0 0.0
        %823 = vmatprep.subr.mxu0 0.0
        %824 = vmatpush1.msra.mxu0 0.0
        %825 = vmatprep.subr.mxu0 0.0
        %826 = vmatpush1.msra.mxu0 0.0
        %827 = vmatprep.subr.mxu0 0.0
        %828 = vmatpush1.msra.mxu0 0.0
        %829 = vmatprep.subr.mxu0 0.0
        %830 = vmatpush1.msra.mxu0 0.0
        %831 = vmatprep.subr.mxu0 0.0
        %832 = vmatpush1.msra.mxu0 0.0
        %833 = vmatprep.subr.mxu0 0.0
        %834 = vmatpush1.msra.mxu0 0.0
        %835 = vmatprep.subr.mxu0 0.0
        %836 = vmatpush1.msra.mxu0 0.0
        %837 = vmatprep.subr.mxu0 0.0
        %838 = vmatpush1.msra.mxu0 0.0
        %839 = vmatprep.subr.mxu0 0.0
        %840 = vmatpush1.msra.mxu0 0.0
        %841 = vmatprep.subr.mxu0 0.0
        %842 = vmatpush1.msra.mxu0 0.0
        %843 = vmatprep.subr.mxu0 0.0
        %844 = vmatpush1.msra.mxu0 0.0
        %845 = vmatprep.subr.mxu0 0.0
        %846 = vmatpush1.msra.mxu0 0.0
        %847 = vmatprep.subr.mxu0 0.0
        %848 = vmatpush1.msra.mxu0 0.0
        %849 = vmatprep.subr.mxu0 0.0
        %850 = vmatpush1.msra.mxu0 0.0
        %851 = vmatprep.subr.mxu0 0.0
        %852 = vmatpush1.msra.mxu0 0.0
        %853 = vmatprep.subr.mxu0 0.0
        %854 = vmatpush1.msra.mxu0 0.0
        %855 = vmatprep.subr.mxu0 0.0
        %856 = vmatpush1.msra.mxu0 0.0
        %857 = vmatprep.subr.mxu0 0.0
        %858 = vmatpush1.msra.mxu0 0.0
        %859 = vmatprep.mubr.f32.mxu0 0.0
        %v860 = vand.u32 %v453, 4294901760
        %v861 = vsub.f32 %v453, %v860
        %v862 = vand.u32 %v861, 4294901760
        %863 = vmatmul.mubr.f32.gmra.mrb[0].mxu0 %v862
        %v864 = vpop.f32.mrb[0].mxu0
        %v865 = vadd.f32 %v762, %v864
        %v866 = vpop.f32.mrb[0].mxu0
        %867 = vmatprep.mubr.f32.mxu0 0.0
        %v868 = vand.u32 %v456, 4294901760
        %v869 = vsub.f32 %v456, %v868
        %v870 = vand.u32 %v869, 4294901760
        %871 = vmatmul.mubr.f32.gmra.mrb[0].mxu0 %v870
        %v872 = vpop.f32.mrb[0].mxu0
        %v873 = vadd.f32 %v769, %v872
        %v874 = vpop.f32.mrb[0].mxu0
        %875 = vmatprep.mubr.f32.mxu0 0.0
        %v876 = vand.u32 %v459, 4294901760
        %v877 = vsub.f32 %v459, %v876
        %v878 = vand.u32 %v877, 4294901760
        %879 = vmatmul.mubr.f32.gmra.mrb[0].mxu0 %v878
        %v880 = vpop.f32.mrb[0].mxu0
        %v881 = vadd.f32 %v776, %v880
        %v882 = vpop.f32.mrb[0].mxu0
        %883 = vmatprep.mubr.f32.mxu0 0.0
        %v884 = vand.u32 %v462, 4294901760
        %v885 = vsub.f32 %v462, %v884
        %v886 = vand.u32 %v885, 4294901760
        %887 = vmatmul.mubr.f32.gmra.mrb[0].mxu0 %v886
        %v888 = vpop.f32.mrb[0].mxu0
        %v889 = vadd.f32 %v783, %v888
        %v890 = vpop.f32.mrb[0].mxu0
        %891 = vmatprep.mubr.f32.mxu0 0.0
        %v892 = vand.u32 %v465, 4294901760
        %v893 = vsub.f32 %v465, %v892
        %v894 = vand.u32 %v893, 4294901760
        %895 = vmatmul.mubr.f32.gmra.mrb[0].mxu0 %v894
        %v896 = vpop.f32.mrb[0].mxu0
        %v897 = vadd.f32 %v790, %v896
        %v898 = vpop.f32.mrb[0].mxu0
        %899 = vdwg.mxu0
        %900 = vmatprep.subr.mxu0 0.0
        %v901 = vand.u32 %v449, 4294901760
        %v902 = vsub.f32 %v449, %v901
        %v903 = vand.u32 %v902, 4294901760
        %904 = vmatpush1.msra.mxu0 %v903
        %905 = vmatprep.subr.mxu0 0.0
        %v906 = vand.u32 %v450, 4294901760
        %v907 = vsub.f32 %v450, %v906
        %v908 = vand.u32 %v907, 4294901760
        %909 = vmatpush1.msra.mxu0 %v908
        %910 = vmatprep.subr.mxu0 0.0
        %911 = vmatpush1.msra.mxu0 0.0
        %912 = vmatprep.subr.mxu0 0.0
        %913 = vmatpush1.msra.mxu0 0.0
        %914 = vmatprep.subr.mxu0 0.0
        %915 = vmatpush1.msra.mxu0 0.0
        %916 = vmatprep.subr.mxu0 0.0
        %917 = vmatpush1.msra.mxu0 0.0
        %918 = vmatprep.subr.mxu0 0.0
        %919 = vmatpush1.msra.mxu0 0.0
        %920 = vmatprep.subr.mxu0 0.0
        %921 = vmatpush1.msra.mxu0 0.0
        %922 = vmatprep.subr.mxu0 0.0
        %923 = vmatpush1.msra.mxu0 0.0
        %924 = vmatprep.subr.mxu0 0.0
        %925 = vmatpush1.msra.mxu0 0.0
        %926 = vmatprep.subr.mxu0 0.0
        %927 = vmatpush1.msra.mxu0 0.0
        %928 = vmatprep.subr.mxu0 0.0
        %929 = vmatpush1.msra.mxu0 0.0
        %930 = vmatprep.subr.mxu0 0.0
        %931 = vmatpush1.msra.mxu0 0.0
        %932 = vmatprep.subr.mxu0 0.0
        %933 = vmatpush1.msra.mxu0 0.0
        %934 = vmatprep.subr.mxu0 0.0
        %935 = vmatpush1.msra.mxu0 0.0
        %936 = vmatprep.subr.mxu0 0.0
        %937 = vmatpush1.msra.mxu0 0.0
        %938 = vmatprep.subr.mxu0 0.0
        %939 = vmatpush1.msra.mxu0 0.0
        %940 = vmatprep.subr.mxu0 0.0
        %941 = vmatpush1.msra.mxu0 0.0
        %942 = vmatprep.subr.mxu0 0.0
        %943 = vmatpush1.msra.mxu0 0.0
        %944 = vmatprep.subr.mxu0 0.0
        %945 = vmatpush1.msra.mxu0 0.0
        %946 = vmatprep.subr.mxu0 0.0
        %947 = vmatpush1.msra.mxu0 0.0
        %948 = vmatprep.subr.mxu0 0.0
        %949 = vmatpush1.msra.mxu0 0.0
        %950 = vmatprep.subr.mxu0 0.0
        %951 = vmatpush1.msra.mxu0 0.0
        %952 = vmatprep.subr.mxu0 0.0
        %953 = vmatpush1.msra.mxu0 0.0
        %954 = vmatprep.subr.mxu0 0.0
        %955 = vmatpush1.msra.mxu0 0.0
        %956 = vmatprep.subr.mxu0 0.0
        %957 = vmatpush1.msra.mxu0 0.0
        %958 = vmatprep.subr.mxu0 0.0
        %959 = vmatpush1.msra.mxu0 0.0
        %960 = vmatprep.subr.mxu0 0.0
        %961 = vmatpush1.msra.mxu0 0.0
        %962 = vmatprep.subr.mxu0 0.0
        %963 = vmatpush1.msra.mxu0 0.0
        %964 = vmatprep.subr.mxu0 0.0
        %965 = vmatpush1.msra.mxu0 0.0
        %966 = vmatprep.subr.mxu0 0.0
        %967 = vmatpush1.msra.mxu0 0.0
        %968 = vmatprep.subr.mxu0 0.0
        %969 = vmatpush1.msra.mxu0 0.0
        %970 = vmatprep.mubr.f32.mxu0 0.0
        %v971 = vand.u32 %v453, 4294901760
        %972 = vmatmul.mubr.f32.gmra.mrb[0].mxu0 %v971
        %v973 = vpop.f32.mrb[0].mxu0
        %v974 = vadd.f32 %v865, %v973
        %v975 = vpop.f32.mrb[0].mxu0
        %976 = vmatprep.mubr.f32.mxu0 0.0
        %v977 = vand.u32 %v456, 4294901760
        %978 = vmatmul.mubr.f32.gmra.mrb[0].mxu0 %v977
        %v979 = vpop.f32.mrb[0].mxu0
        %v980 = vadd.f32 %v873, %v979
        %v981 = vpop.f32.mrb[0].mxu0
        %982 = vmatprep.mubr.f32.mxu0 0.0
        %v983 = vand.u32 %v459, 4294901760
        %984 = vmatmul.mubr.f32.gmra.mrb[0].mxu0 %v983
        %v985 = vpop.f32.mrb[0].mxu0
        %v986 = vadd.f32 %v881, %v985
        %v987 = vpop.f32.mrb[0].mxu0
        %988 = vmatprep.mubr.f32.mxu0 0.0
        %v989 = vand.u32 %v462, 4294901760
        %990 = vmatmul.mubr.f32.gmra.mrb[0].mxu0 %v989
        %v991 = vpop.f32.mrb[0].mxu0
        %v992 = vadd.f32 %v889, %v991
        %v993 = vpop.f32.mrb[0].mxu0
        %994 = vmatprep.mubr.f32.mxu0 0.0
        %v995 = vand.u32 %v465, 4294901760
        %996 = vmatmul.mubr.f32.gmra.mrb[0].mxu0 %v995
        %v997 = vpop.f32.mrb[0].mxu0
        %v998 = vadd.f32 %v897, %v997
        %v999 = vpop.f32.mrb[0].mxu0
        %1000 = vdwg.mxu0
        %1001 = vmatprep.subr.mxu0 0.0
        %v1002 = vand.u32 %v449, 4294901760
        %1003 = vmatpush1.msra.mxu0 %v1002
        %1004 = vmatprep.subr.mxu0 0.0
        %v1005 = vand.u32 %v450, 4294901760
        %1006 = vmatpush1.msra.mxu0 %v1005
        %1007 = vmatprep.subr.mxu0 0.0
        %1008 = vmatpush1.msra.mxu0 0.0
        %1009 = vmatprep.subr.mxu0 0.0
        %1010 = vmatpush1.msra.mxu0 0.0
        %1011 = vmatprep.subr.mxu0 0.0
        %1012 = vmatpush1.msra.mxu0 0.0
        %1013 = vmatprep.subr.mxu0 0.0
        %1014 = vmatpush1.msra.mxu0 0.0
        %1015 = vmatprep.subr.mxu0 0.0
        %1016 = vmatpush1.msra.mxu0 0.0
        %1017 = vmatprep.subr.mxu0 0.0
        %1018 = vmatpush1.msra.mxu0 0.0
        %1019 = vmatprep.subr.mxu0 0.0
        %1020 = vmatpush1.msra.mxu0 0.0
        %1021 = vmatprep.subr.mxu0 0.0
        %1022 = vmatpush1.msra.mxu0 0.0
        %1023 = vmatprep.subr.mxu0 0.0
        %1024 = vmatpush1.msra.mxu0 0.0
        %1025 = vmatprep.subr.mxu0 0.0
        %1026 = vmatpush1.msra.mxu0 0.0
        %1027 = vmatprep.subr.mxu0 0.0
        %1028 = vmatpush1.msra.mxu0 0.0
        %1029 = vmatprep.subr.mxu0 0.0
        %1030 = vmatpush1.msra.mxu0 0.0
        %1031 = vmatprep.subr.mxu0 0.0
        %1032 = vmatpush1.msra.mxu0 0.0
        %1033 = vmatprep.subr.mxu0 0.0
        %1034 = vmatpush1.msra.mxu0 0.0
        %1035 = vmatprep.subr.mxu0 0.0
        %1036 = vmatpush1.msra.mxu0 0.0
        %1037 = vmatprep.subr.mxu0 0.0
        %1038 = vmatpush1.msra.mxu0 0.0
        %1039 = vmatprep.subr.mxu0 0.0
        %1040 = vmatpush1.msra.mxu0 0.0
        %1041 = vmatprep.subr.mxu0 0.0
        %1042 = vmatpush1.msra.mxu0 0.0
        %1043 = vmatprep.subr.mxu0 0.0
        %1044 = vmatpush1.msra.mxu0 0.0
        %1045 = vmatprep.subr.mxu0 0.0
        %1046 = vmatpush1.msra.mxu0 0.0
        %1047 = vmatprep.subr.mxu0 0.0
        %1048 = vmatpush1.msra.mxu0 0.0
        %1049 = vmatprep.subr.mxu0 0.0
        %1050 = vmatpush1.msra.mxu0 0.0
        %1051 = vmatprep.subr.mxu0 0.0
        %1052 = vmatpush1.msra.mxu0 0.0
        %1053 = vmatprep.subr.mxu0 0.0
        %1054 = vmatpush1.msra.mxu0 0.0
        %1055 = vmatprep.subr.mxu0 0.0
        %1056 = vmatpush1.msra.mxu0 0.0
        %1057 = vmatprep.subr.mxu0 0.0
        %1058 = vmatpush1.msra.mxu0 0.0
        %1059 = vmatprep.subr.mxu0 0.0
        %1060 = vmatpush1.msra.mxu0 0.0
        %1061 = vmatprep.subr.mxu0 0.0
        %1062 = vmatpush1.msra.mxu0 0.0
        %1063 = vmatprep.subr.mxu0 0.0
        %1064 = vmatpush1.msra.mxu0 0.0
        %1065 = vmatprep.subr.mxu0 0.0
        %1066 = vmatpush1.msra.mxu0 0.0
        %1067 = vmatprep.mubr.f32.mxu0 0.0
        %v1068 = vand.u32 %v453, 4294901760
        %1069 = vmatmul.mubr.f32.gmra.mrb[0].mxu0 %v1068
        %v1070 = vpop.f32.mrb[0].mxu0
        %v1071 = vadd.f32 %v974, %v1070
        %v1072 = vpop.f32.mrb[0].mxu0
        %1073 = vmatprep.mubr.f32.mxu0 0.0
        %v1074 = vand.u32 %v456, 4294901760
        %1075 = vmatmul.mubr.f32.gmra.mrb[0].mxu0 %v1074
        %v1076 = vpop.f32.mrb[0].mxu0
        %v1077 = vadd.f32 %v980, %v1076
        %v1078 = vpop.f32.mrb[0].mxu0
        %1079 = vmatprep.mubr.f32.mxu0 0.0
        %v1080 = vand.u32 %v459, 4294901760
        %1081 = vmatmul.mubr.f32.gmra.mrb[0].mxu0 %v1080
        %v1082 = vpop.f32.mrb[0].mxu0
        %v1083 = vadd.f32 %v986, %v1082
        %v1084 = vpop.f32.mrb[0].mxu0
        %1085 = vmatprep.mubr.f32.mxu0 0.0
        %v1086 = vand.u32 %v462, 4294901760
        %1087 = vmatmul.mubr.f32.gmra.mrb[0].mxu0 %v1086
        %v1088 = vpop.f32.mrb[0].mxu0
        %v1089 = vadd.f32 %v992, %v1088
        %v1090 = vpop.f32.mrb[0].mxu0
        %1091 = vmatprep.mubr.f32.mxu0 0.0
        %v1092 = vand.u32 %v465, 4294901760
        %1093 = vmatmul.mubr.f32.gmra.mrb[0].mxu0 %v1092
        %v1094 = vpop.f32.mrb[0].mxu0
        %v1095 = vadd.f32 %v998, %v1094
        %v1096 = vpop.f32.mrb[0].mxu0
        %1097 = vdwg.mxu0
        %1103 = vrot.lane.b32.xlu0 %v1071, 96
        %v1104 = vpop.permute.xlu0 %1103
        %1105 = vrot.lane.b32.xlu0 %v1077, 96
        %v1106 = vpop.permute.xlu0 %1105
        %1107 = vrot.lane.b32.xlu0 %v1083, 96
        %v1108 = vpop.permute.xlu0 %1107
        %1109 = vrot.lane.b32.xlu0 %v1089, 96
        %v1110 = vpop.permute.xlu0 %1109
        %1111 = vrot.lane.b32.xlu0 %v1095, 96
        %v1112 = vpop.permute.xlu0 %1111
        %1118 = vrot.lane.b32.xlu0 %v1071, 64
        %v1119 = vpop.permute.xlu0 %1118
        %1120 = vrot.lane.b32.xlu0 %v1077, 64
        %v1121 = vpop.permute.xlu0 %1120
        %1122 = vrot.lane.b32.xlu0 %v1083, 64
        %v1123 = vpop.permute.xlu0 %1122
        %1124 = vrot.lane.b32.xlu0 %v1089, 64
        %v1125 = vpop.permute.xlu0 %1124
        %1126 = vrot.lane.b32.xlu0 %v1095, 64
        %v1127 = vpop.permute.xlu0 %1126
        %v1133 = vld [vmem:[%s3] sm:$0xff]
        %v1134 = vld [vmem:[%s3 + $0x8] sm:$0xff]
        %v1135 = vld [vmem:[%s3 + $0x10] sm:$0xff]
        %v1136 = vld [vmem:[%s3 + $0x18] sm:$0xff]
        %v1137 = vld [vmem:[%s3 + $0x20] sm:$0xff]
        %v1138 = vld [vmem:[%s3 + $0x28] sm:$0xff]
        %v1139 = vld [vmem:[%s3 + $0x30] sm:$0xff]
        %v1140 = vld [vmem:[%s3 + $0x38] sm:$0xff]
        %v1141 = vld [vmem:[%s4] sm:$0xff]
        %v1142 = vld [vmem:[%s4 + $0x8] sm:$0xff]
        %v1143 = vld [vmem:[%s4 + $0x10] sm:$0xff]
        %v1144 = vld [vmem:[%s4 + $0x18] sm:$0xff]
        %v1145 = vld [vmem:[%s4 + $0x20] sm:$0xff]
        %v1146 = vld [vmem:[%s4 + $0x28] sm:$0xff]
        %v1147 = vld [vmem:[%s4 + $0x30] sm:$0xff]
        %v1148 = vld [vmem:[%s4 + $0x38] sm:$0xff]
        %1150 = vset.pattern.permute.xlu0 0
        %1151 = vperm.xlu0 %1150, %v1141
        %v1152 = vpop.permute.xlu0 %1151
        %1155 = vset.pattern.permute.xlu0 0
        %1156 = vperm.xlu0 %1155, %v1142
        %v1157 = vpop.permute.xlu0 %1156
        %1160 = vset.pattern.permute.xlu0 0
        %1161 = vperm.xlu0 %1160, %v1143
        %v1162 = vpop.permute.xlu0 %1161
        %1165 = vset.pattern.permute.xlu0 0
        %1166 = vperm.xlu0 %1165, %v1144
        %v1167 = vpop.permute.xlu0 %1166
        %1170 = vset.pattern.permute.xlu0 0
        %1171 = vperm.xlu0 %1170, %v1145
        %v1172 = vpop.permute.xlu0 %1171
        %1175 = vset.pattern.permute.xlu0 0
        %1176 = vperm.xlu0 %1175, %v1146
        %v1177 = vpop.permute.xlu0 %1176
        %1180 = vset.pattern.permute.xlu0 0
        %1181 = vperm.xlu0 %1180, %v1147
        %v1182 = vpop.permute.xlu0 %1181
        %1185 = vset.pattern.permute.xlu0 0
        %1186 = vperm.xlu0 %1185, %v1148
        %v1187 = vpop.permute.xlu0 %1186
        %vm1189 = vcmask 982016
        %v1191 = vsel %vm1189, %v1133, 0
        %v1194 = vsel %vm1189, %v1134, 0
        %v1197 = vsel %vm1189, %v1135, 0
        %v1200 = vsel %vm1189, %v1136, 0
        %v1203 = vsel %vm1189, %v1137, 0
        %v1206 = vsel %vm1189, %v1138, 0
        %v1209 = vsel %vm1189, %v1139, 0
        %v1212 = vsel %vm1189, %v1140, 0
        %1214 = vmatprep.subr.mxu0 0.0
        %1215 = vmatpush1.msra.mxu0 %v1071
        %1216 = vmatprep.subr.mxu0 0.0
        %1217 = vmatpush1.msra.mxu0 %v1077
        %1218 = vmatprep.subr.mxu0 0.0
        %1219 = vmatpush1.msra.mxu0 %v1083
        %1220 = vmatprep.subr.mxu0 0.0
        %1221 = vmatpush1.msra.mxu0 %v1089
        %1222 = vmatprep.subr.mxu0 0.0
        %1223 = vmatpush1.msra.mxu0 %v1095
        %1224 = vmatprep.subr.mxu0 0.0
        %1225 = vmatpush1.msra.mxu0 %v1104
        %1226 = vmatprep.subr.mxu0 0.0
        %1227 = vmatpush1.msra.mxu0 %v1106
        %1228 = vmatprep.subr.mxu0 0.0
        %1229 = vmatpush1.msra.mxu0 %v1108
        %1230 = vmatprep.subr.mxu0 0.0
        %1231 = vmatpush1.msra.mxu0 %v1110
        %1232 = vmatprep.subr.mxu0 0.0
        %1233 = vmatpush1.msra.mxu0 %v1112
        %1234 = vmatprep.subr.mxu0 0.0
        %1235 = vmatpush1.msra.mxu0 %v1119
        %1236 = vmatprep.subr.mxu0 0.0
        %1237 = vmatpush1.msra.mxu0 %v1121
        %1238 = vmatprep.subr.mxu0 0.0
        %1239 = vmatpush1.msra.mxu0 %v1123
        %1240 = vmatprep.subr.mxu0 0.0
        %1241 = vmatpush1.msra.mxu0 %v1125
        %1242 = vmatprep.subr.mxu0 0.0
        %1243 = vmatpush1.msra.mxu0 %v1127
        %1244 = vmatprep.subr.mxu0 0.0
        %1245 = vmatpush1.msra.mxu0 0.0
        %1246 = vmatprep.subr.mxu0 0.0
        %1247 = vmatpush1.msra.mxu0 0.0
        %1248 = vmatprep.subr.mxu0 0.0
        %1249 = vmatpush1.msra.mxu0 0.0
        %1250 = vmatprep.subr.mxu0 0.0
        %1251 = vmatpush1.msra.mxu0 0.0
        %1252 = vmatprep.subr.mxu0 0.0
        %1253 = vmatpush1.msra.mxu0 0.0
        %1254 = vmatprep.subr.mxu0 0.0
        %1255 = vmatpush1.msra.mxu0 0.0
        %1256 = vmatprep.subr.mxu0 0.0
        %1257 = vmatpush1.msra.mxu0 0.0
        %1258 = vmatprep.subr.mxu0 0.0
        %1259 = vmatpush1.msra.mxu0 0.0
        %1260 = vmatprep.subr.mxu0 0.0
        %1261 = vmatpush1.msra.mxu0 0.0
        %1262 = vmatprep.subr.mxu0 0.0
        %1263 = vmatpush1.msra.mxu0 0.0
        %1264 = vmatprep.subr.mxu0 0.0
        %1265 = vmatpush1.msra.mxu0 0.0
        %1266 = vmatprep.subr.mxu0 0.0
        %1267 = vmatpush1.msra.mxu0 0.0
        %1268 = vmatprep.subr.mxu0 0.0
        %1269 = vmatpush1.msra.mxu0 0.0
        %1270 = vmatprep.subr.mxu0 0.0
        %1271 = vmatpush1.msra.mxu0 0.0
        %1272 = vmatprep.subr.mxu0 0.0
        %1273 = vmatpush1.msra.mxu0 0.0
        %1274 = vmatprep.subr.mxu0 0.0
        %1275 = vmatpush1.msra.mxu0 0.0
        %1276 = vmatprep.subr.mxu0 0.0
        %1277 = vmatpush1.msra.mxu0 0.0
        %1278 = vmatprep.mubr.f32.mxu0 0.0
        %1279 = vmatmul.mubr.f32.gmra.mrb[0].mxu0 %v1191
        %v1280 = vpop.f32.mrb[0].mxu0
        %v1281 = vadd.f32 %v1152, %v1280
        %v1282 = vpop.f32.mrb[0].mxu0
        %1283 = vmatprep.mubr.f32.mxu0 0.0
        %1284 = vmatmul.mubr.f32.gmra.mrb[0].mxu0 %v1194
        %v1285 = vpop.f32.mrb[0].mxu0
        %v1286 = vadd.f32 %v1157, %v1285
        %v1287 = vpop.f32.mrb[0].mxu0
        %1288 = vmatprep.mubr.f32.mxu0 0.0
        %1289 = vmatmul.mubr.f32.gmra.mrb[0].mxu0 %v1197
        %v1290 = vpop.f32.mrb[0].mxu0
        %v1291 = vadd.f32 %v1162, %v1290
        %v1292 = vpop.f32.mrb[0].mxu0
        %1293 = vmatprep.mubr.f32.mxu0 0.0
        %1294 = vmatmul.mubr.f32.gmra.mrb[0].mxu0 %v1200
        %v1295 = vpop.f32.mrb[0].mxu0
        %v1296 = vadd.f32 %v1167, %v1295
        %v1297 = vpop.f32.mrb[0].mxu0
        %1298 = vmatprep.mubr.f32.mxu0 0.0
        %1299 = vmatmul.mubr.f32.gmra.mrb[0].mxu0 %v1203
        %v1300 = vpop.f32.mrb[0].mxu0
        %v1301 = vadd.f32 %v1172, %v1300
        %v1302 = vpop.f32.mrb[0].mxu0
        %1303 = vmatprep.mubr.f32.mxu0 0.0
        %1304 = vmatmul.mubr.f32.gmra.mrb[0].mxu0 %v1206
        %v1305 = vpop.f32.mrb[0].mxu0
        %v1306 = vadd.f32 %v1177, %v1305
        %v1307 = vpop.f32.mrb[0].mxu0
        %1308 = vmatprep.mubr.f32.mxu0 0.0
        %1309 = vmatmul.mubr.f32.gmra.mrb[0].mxu0 %v1209
        %v1310 = vpop.f32.mrb[0].mxu0
        %v1311 = vadd.f32 %v1182, %v1310
        %v1312 = vpop.f32.mrb[0].mxu0
        %1313 = vmatprep.mubr.f32.mxu0 0.0
        %1314 = vmatmul.mubr.f32.gmra.mrb[0].mxu0 %v1212
        %v1315 = vpop.f32.mrb[0].mxu0
        %v1316 = vadd.f32 %v1187, %v1315
        %v1317 = vpop.f32.mrb[0].mxu0
        %1318 = vdwg.mxu0
        %v1319 = vmax.f32 %v1281, 0.0
        %v1320 = vmax.f32 %v1286, 0.0
        %v1321 = vmax.f32 %v1291, 0.0
        %v1322 = vmax.f32 %v1296, 0.0
        %v1323 = vmax.f32 %v1301, 0.0
        %v1324 = vmax.f32 %v1306, 0.0
        %v1325 = vmax.f32 %v1311, 0.0
        %v1326 = vmax.f32 %v1316, 0.0
        %vm1327 = vcmask 261120
        %1328 = vst.msk [vmem:[%s251] sm:$0xff] %vm1327, %v1319
        %1329 = vst.msk [vmem:[%s251 + $0x8] sm:$0xff] %vm1327, %v1320
        %1330 = vst.msk [vmem:[%s251 + $0x10] sm:$0xff] %vm1327, %v1321
        %1331 = vst.msk [vmem:[%s251 + $0x18] sm:$0xff] %vm1327, %v1322
        %1332 = vst.msk [vmem:[%s251 + $0x20] sm:$0xff] %vm1327, %v1323
        %1333 = vst.msk [vmem:[%s251 + $0x28] sm:$0xff] %vm1327, %v1324
        %1334 = vst.msk [vmem:[%s251 + $0x30] sm:$0xff] %vm1327, %v1325
        %1335 = vst.msk [vmem:[%s251 + $0x38] sm:$0xff] %vm1327, %v1326
        %s1336 = sand.u32 %s140, 1
        %s1337 = scalar_lea.sflag [#allocation6], %s1336
        %s1338 = sand.u32 %s140, 1
        %s1339 = smul.addr %s1338, 64
        %s1340 = scalar_lea.vmem [#allocation9], %s1339
        // Predicated region
        $region45: #{tpu_custom_call.1} parent=35 // pred_check
          %p1341 = pneg %p150
        $region46: #{tpu_custom_call.1} parent=35 // pred_check_branch
          %1343 = sbr.rel (%p1341) target = $region48
        $region47: #{tpu_custom_call.1} parent=35 // pred_region
          %s1345 = ssub.s32 1024, 1024
          %1346 = vsyncadd %s1337, %s1345
          %s1347 = smul.addr %s33, 32
          %s1348 = sadd.s32 %s34, %s1347
          %s1349 = smul.addr %s1348, 128
          %s1350 = scalar_lea.hbm %s5, %s1349
          %s1351 = sshll.u32 %s1340, 4
          %s1352 = int_to_ptr.vmem [resolvable:$true] %s1351
          %1357 = dma.vmem_to_hbm [thread:$0]  %s1352, 1024, %s1350, %s1337, 128, 512, 8
        $region48: #{tpu_custom_call.1} parent=35 // pred_fallthru
          _
      $region36: #{tpu_custom_call.1} parent=5 // pred_fallthru
        _
      %p1358 = scmp.le.s32.totalorder 2, %s24
      // Predicated region
      $region49: #{tpu_custom_call.1} parent=5 // pred_check
        %p1359 = pneg %p1358
      $region50: #{tpu_custom_call.1} parent=5 // pred_check_branch
        %1361 = sbr.rel (%p1359) target = $region52
      $region51: #{tpu_custom_call.1} parent=5 // pred_region
        %s1362 = ssub.s32 %s24, 2
        // Predicated region
        $region53: #{tpu_custom_call.1} parent=51 // pred_check
          %p1363 = pneg %p156
        $region54: #{tpu_custom_call.1} parent=51 // pred_check_branch
          %1365 = sbr.rel (%p1363) target = $region56
        $region55: #{tpu_custom_call.1} parent=51 // pred_region
          %s1366 = sand.u32 %s141, 1
          %s1367 = scalar_lea.sflag [#allocation6], %s1366
          %s1368 = sand.u32 %s141, 1
          %s1369 = smul.addr %s1368, 64
          %s1370 = scalar_lea.vmem [#allocation9], %s1369
          %1371 = dma.done %s1367, 1024
        $region56: #{tpu_custom_call.1} parent=51 // pred_fallthru
          _
      $region52: #{tpu_custom_call.1} parent=5 // pred_fallthru
        _
    $region6: #{tpu_custom_call.1} parent=1 // loop_footer
      %s28 = sadd.s32 1, %s24
    $region7: #{tpu_custom_call.1} parent=1 // loop_footer_branch
      %23 = sbr.rel target = $region3
    $region8: #{tpu_custom_call.1} parent=1 // loop_exit
      _
    %1372 = vsyncpa [#allocation5], 1
    %s1373 = scalar_lea.sflag [#allocation5], 1
    %1374 = vsyncpa %s1373, 1
    %1375 = vsyncpa [#allocation8], 1
    %1376 = vsyncpa [#allocation6], 1
    %s1377 = scalar_lea.sflag [#allocation6], 1
    %1378 = vsyncpa %s1377, 1

</llo_original>
